<compile_context>
chip_gen: v6e
topology: v6e:2x2x1
jax: 0.10.0
libtpu: 0.0.40
codegen_flags: <defaults>
</compile_context>

<pallas_src>
import jax
import jax.numpy as jnp
from jax import lax
from jax.experimental import pallas as pl
from jax.experimental.pallas import tpu as pltpu

LANES = 128   # f32 vreg lane width
CHUNK = 16    # rows per inner chunk (2 f32 vregs per live value)


def _round_up(a: int, b: int) -> int:
    return ((a + b - 1) // b) * b


def _cdiv(a: int, b: int) -> int:
    return -(-a // b)


def _tree_sum(terms):
    """Pairwise (tree) reduction -> shorter dep chains, better VLIW packing."""
    terms = list(terms)
    while len(terms) > 1:
        nxt = [terms[i] + terms[i + 1] for i in range(0, len(terms) - 1, 2)]
        if len(terms) % 2:
            nxt.append(terms[-1])
        terms = nxt
    return terms[0]


def _make_nignn_kernel(hidden_dim, output_dim, n_hidden_layers, use_softplus,
                       tile_rows):
    """Build the kernel.

    Ref order:
      x_ref (VMEM, (tile_rows,128)),
      flattened (w, b) SMEM refs for the n_hidden_layers backbone Linear layers,
      flattened (w, b) SMEM refs for fc_gamma, fc_nu, fc_alpha, fc_beta,
      out_ref (VMEM, (4*output_dim, tile_rows, 128)).
    """
    H, O = hidden_dim, output_dim
    n_backbone = n_hidden_layers
    n_param_refs = 2 * (n_backbone + 4)
    n_chunks = tile_rows // CHUNK

    def softplus(v):
        # Exact, numerically stable softplus (== jax.nn.softplus finite values)
        # without logaddexp's extra isnan/select guards.
        return jnp.maximum(v, jnp.float32(0.0)) + jnp.log1p(jnp.exp(-jnp.abs(v)))

    act = softplus if use_softplus else (lambda v: jnp.maximum(v, jnp.float32(0.0)))

    def kernel(*refs):
        x_ref = refs[0]
        param_refs = refs[1:1 + n_param_refs]
        out_ref = refs[1 + n_param_refs]

        # ---- hoist every SMEM scalar read out of the chunk loop (loop-invariant) ----
        w0 = [param_refs[0][j] for j in range(H)]              # Linear(1,H) weights
        b0 = [param_refs[1][j] for j in range(H)]
        hid_w, hid_b = [], []
        for l in range(1, n_backbone):                         # Linear(H,H) layers
            wr, br = param_refs[2 * l], param_refs[2 * l + 1]
            hid_w.append([wr[i] for i in range(H * H)])        # w[j,k] at flat j*H+k
            hid_b.append([br[k] for k in range(H)])
        base = 2 * n_backbone
        head_w, head_b = [], []
        for s in range(4):                                     # gamma, nu, alpha, beta
            wr, br = param_refs[base + 2 * s], param_refs[base + 2 * s + 1]
            head_w.append([wr[i] for i in range(H * O)])       # w[j,o] at flat j*O+o
            head_b.append([br[o] for o in range(O)])

        head_post = (lambda v: v,                               # gamma
                     softplus,                                  # nu
                     lambda v: softplus(v) + jnp.float32(1.0),  # alpha
                     softplus)                                  # beta

        def chunk_body(c, carry):
            off = pl.multiple_of(c * CHUNK, CHUNK)
            x = x_ref[pl.ds(off, CHUNK), :]                     # (CHUNK, 128)

            # backbone layer 0: Linear(1,H) -> one broadcast FMA per hidden unit
            h = [act(x * w0[j] + b0[j]) for j in range(H)]

            # backbone layers 1..L-1: Linear(H,H), unrolled VPU FMAs, tree-summed
            for li in range(n_backbone - 1):
                ws, bs = hid_w[li], hid_b[li]
                h = [act(_tree_sum([h[j] * ws[j * H + k] for j in range(H)]) + bs[k])
                     for k in range(H)]

            # heads: Linear(H,O) + per-head post, lane-dense per-chunk store
            for s in range(4):
                ws, bs, post = head_w[s], head_b[s], head_post[s]
                for o in range(O):
                    v = _tree_sum([h[j] * ws[j * O + o] for j in range(H)]) + bs[o]
                    out_ref[s * O + o, pl.ds(off, CHUNK), :] = post(v)
            return carry

        lax.fori_loop(0, n_chunks, chunk_body, 0,
                      unroll=2 if n_chunks >= 2 else 1)

    return kernel


def _choose_tile_rows(rows: int, max_tile_rows: int) -> int:
    """Adaptive tile: >=2 grid steps whenever possible (v7x 2 TCs), bounded padding."""
    max_tile_rows = max(CHUNK, _round_up(max_tile_rows, CHUNK))
    if rows <= CHUNK:
        return CHUNK
    target_steps = max(2, _cdiv(rows, max_tile_rows))
    tile = _round_up(_cdiv(rows, target_steps), CHUNK)
    return max(CHUNK, min(tile, max_tile_rows))


def nignn_forward(x, params, *, use_softplus=True, max_tile_rows=1024):
    """Pallas forward pass of NIGNN.

    x:      (N, 1) float32 (any N; padded internally)
    params: dict with
            "backbone": list of (W:(in,out), b:(1,out)) for the Sequential part
            "gamma"/"nu"/"alpha"/"beta": (W:(H,O), b:(1,O))
    returns (gamma, nu, alpha, beta), each (N, O) float32
    """
    n = x.shape[0]
    backbone = params["backbone"]
    hidden_dim = backbone[0][0].shape[1]
    output_dim = params["gamma"][0].shape[1]
    n_hidden_layers = len(backbone)

    # --- lane-dense batch layout: (N,1) -> (rows_pad, 128), sample = row*128+lane ---
    rows = _cdiv(n, LANES)
    tile_rows = _choose_tile_rows(rows, max_tile_rows)
    rows_pad = _round_up(max(rows, tile_rows), tile_rows)
    n_pad = rows_pad * LANES

    x_flat = jnp.ravel(x.astype(jnp.float32))
    x_flat = jnp.pad(x_flat, (0, n_pad - n))
    x2d = x_flat.reshape(rows_pad, LANES)

    grid = (rows_pad // tile_rows,)

    # --- specs: x / output tiled over batch rows, 1-D weights whole in SMEM ---
    smem_spec = pl.BlockSpec(memory_space=pltpu.MemorySpace.SMEM)
    in_specs = [pl.BlockSpec((tile_rows, LANES), lambda i: (i, 0))]
    flat_params = [x2d]
    for (w, b) in backbone:
        flat_params.extend([jnp.ravel(w.astype(jnp.float32)),
                            jnp.ravel(b.astype(jnp.float32))])
        in_specs.extend([smem_spec, smem_spec])
    for name in ("gamma", "nu", "alpha", "beta"):
        w, b = params[name]
        flat_params.extend([jnp.ravel(w.astype(jnp.float32)),
                            jnp.ravel(b.astype(jnp.float32))])
        in_specs.extend([smem_spec, smem_spec])

    out_spec = pl.BlockSpec((4 * output_dim, tile_rows, LANES), lambda i: (0, i, 0))
    out_shape = jax.ShapeDtypeStruct((4 * output_dim, rows_pad, LANES), jnp.float32)

    H, O, L = hidden_dim, output_dim, n_hidden_layers
    n_softplus = (H * L if use_softplus else 0) + 3 * O
    cost = pl.CostEstimate(
        flops=int(n_pad * (2 * H + 2 * H * H * max(L - 1, 0) + 8 * H * O)),
        transcendentals=int(n_pad * 2 * n_softplus),
        bytes_accessed=int(4 * n_pad * (1 + 4 * O)),
    )

    kernel = _make_nignn_kernel(hidden_dim, output_dim, n_hidden_layers,
                                use_softplus, tile_rows)

    out = pl.pallas_call(
        kernel,
        out_shape=out_shape,
        grid=grid,
        in_specs=in_specs,
        out_specs=out_spec,
        compiler_params=pltpu.CompilerParams(
            dimension_semantics=("parallel",),
        ),
        cost_estimate=cost,
    )(*flat_params)

    out = out.reshape(4, output_dim, n_pad)   # (4, O, rows_pad*128)

    def unpack(o3):
        return o3.T[:n]                       # (N, O)

    return unpack(out[0]), unpack(out[1]), unpack(out[2]), unpack(out[3])


# ----------------------------------------------------------------------------- #
# Parameter init (mimics nn.Linear default U(-1/sqrt(fan_in), +)) and reference #
# ----------------------------------------------------------------------------- #
def init_params(key, hidden_dim=10, output_dim=1, n_hidden_layers=1):
    def linear(k, fan_in, fan_out):
        kw, kb = jax.random.split(k)
        bound = 1.0 / (fan_in ** 0.5)
        w = jax.random.uniform(kw, (fan_in, fan_out), jnp.float32, -bound, bound)
        b = jax.random.uniform(kb, (1, fan_out), jnp.float32, -bound, bound)
        return w, b

    keys = jax.random.split(key, n_hidden_layers + 4)
    backbone = [linear(keys[0], 1, hidden_dim)]
    for i in range(1, n_hidden_layers):
        backbone.append(linear(keys[i], hidden_dim, hidden_dim))
    params = {"backbone": backbone}
    for j, name in enumerate(("gamma", "nu", "alpha", "beta")):
        params[name] = linear(keys[n_hidden_layers + j], hidden_dim, output_dim)
    return params


def reference_forward(x, params, use_softplus=True):
    hi = jax.lax.Precision.HIGHEST
    h = x
    for (w, b) in params["backbone"]:
        h = jnp.dot(h, w, precision=hi) + b
        h = jax.nn.softplus(h) if use_softplus else jax.nn.relu(h)

    def lin(name):
        w, b = params[name]
        return jnp.dot(h, w, precision=hi) + b

    gamma = lin("gamma")
    nu = jax.nn.softplus(lin("nu"))
    alpha = jax.nn.softplus(lin("alpha")) + 1.0
    beta = jax.nn.softplus(lin("beta"))
    return gamma, nu, alpha, beta


def _check(x, params, use_softplus, output_dim):
    outs = nignn_forward(x, params, use_softplus=use_softplus)
    outs = jax.block_until_ready(outs)
    refs = reference_forward(x, params, use_softplus=use_softplus)
    n = x.shape[0]
    for got, ref, name in zip(outs, refs, ("gamma", "nu", "alpha", "beta")):
        assert got.shape == (n, output_dim), f"{name} shape {got.shape}"
        assert jnp.allclose(got, ref, atol=1e-5, rtol=1e-4), f"{name} mismatch"


if __name__ == "__main__":
    key = jax.random.PRNGKey(0)

    # config 1: softplus, 2 hidden layers (exercises Linear(1,H) + Linear(H,H))
    hidden_dim, output_dim, n_hidden_layers = 10, 1, 2
    key, kx, kp = jax.random.split(key, 3)
    x = jax.random.normal(kx, (1000, 1), jnp.float32)      # N not a multiple of 128
    params = init_params(kp, hidden_dim, output_dim, n_hidden_layers)
    _check(x, params, use_softplus=True, output_dim=output_dim)

    # config 2: ReLU backbone, single hidden layer, multi-dim output
    hidden_dim2, output_dim2, n_hidden_layers2 = 10, 2, 1
    key, kx2, kp2 = jax.random.split(key, 3)
    x2 = jax.random.normal(kx2, (300, 1), jnp.float32)
    params2 = init_params(kp2, hidden_dim2, output_dim2, n_hidden_layers2)
    _check(x2, params2, use_softplus=False, output_dim=output_dim2)

    print("KERNEL_OK")
</pallas_src>

<mosaic_0001>
module attributes {stable_mosaic.version = 11 : i64} {
  func.func @kernel(%arg0: i32, %arg1: memref<16x128xf32, #tpu.memory_space<vmem>>, %arg2: memref<10xf32, #tpu.memory_space<smem>>, %arg3: memref<10xf32, #tpu.memory_space<smem>>, %arg4: memref<100xf32, #tpu.memory_space<smem>>, %arg5: memref<10xf32, #tpu.memory_space<smem>>, %arg6: memref<10xf32, #tpu.memory_space<smem>>, %arg7: memref<1xf32, #tpu.memory_space<smem>>, %arg8: memref<10xf32, #tpu.memory_space<smem>>, %arg9: memref<1xf32, #tpu.memory_space<smem>>, %arg10: memref<10xf32, #tpu.memory_space<smem>>, %arg11: memref<1xf32, #tpu.memory_space<smem>>, %arg12: memref<10xf32, #tpu.memory_space<smem>>, %arg13: memref<1xf32, #tpu.memory_space<smem>>, %arg14: memref<4x16x128xf32, #tpu.memory_space<vmem>>) attributes {dimension_semantics = [#tpu.dimension_semantics<parallel>], iteration_bounds = array<i64: 1>, scalar_prefetch = 0 : i64, scratch_operands = 0 : i64, tpu.core_type = #tpu.core_type<tc>, window_params = [{transform_indices = @transform_0, window_bounds = array<i64: 16, 128>}, {transform_indices = @transform_1, window_bounds = array<i64: 10>}, {transform_indices = @transform_2, window_bounds = array<i64: 10>}, {transform_indices = @transform_3, window_bounds = array<i64: 100>}, {transform_indices = @transform_4, window_bounds = array<i64: 10>}, {transform_indices = @transform_5, window_bounds = array<i64: 10>}, {transform_indices = @transform_6, window_bounds = array<i64: 1>}, {transform_indices = @transform_7, window_bounds = array<i64: 10>}, {transform_indices = @transform_8, window_bounds = array<i64: 1>}, {transform_indices = @transform_9, window_bounds = array<i64: 10>}, {transform_indices = @transform_10, window_bounds = array<i64: 1>}, {transform_indices = @transform_11, window_bounds = array<i64: 10>}, {transform_indices = @transform_12, window_bounds = array<i64: 1>}, {transform_indices = @transform_13, window_bounds = array<i64: 4, 16, 128>}]} {
    %c0 = arith.constant 0 : index
    %0 = memref.load %arg2[%c0] : memref<10xf32, #tpu.memory_space<smem>>
    %c1 = arith.constant 1 : index
    %1 = memref.load %arg2[%c1] : memref<10xf32, #tpu.memory_space<smem>>
    %c2 = arith.constant 2 : index
    %2 = memref.load %arg2[%c2] : memref<10xf32, #tpu.memory_space<smem>>
    %c3 = arith.constant 3 : index
    %3 = memref.load %arg2[%c3] : memref<10xf32, #tpu.memory_space<smem>>
    %c4 = arith.constant 4 : index
    %4 = memref.load %arg2[%c4] : memref<10xf32, #tpu.memory_space<smem>>
    %c5 = arith.constant 5 : index
    %5 = memref.load %arg2[%c5] : memref<10xf32, #tpu.memory_space<smem>>
    %c6 = arith.constant 6 : index
    %6 = memref.load %arg2[%c6] : memref<10xf32, #tpu.memory_space<smem>>
    %c7 = arith.constant 7 : index
    %7 = memref.load %arg2[%c7] : memref<10xf32, #tpu.memory_space<smem>>
    %c8 = arith.constant 8 : index
    %8 = memref.load %arg2[%c8] : memref<10xf32, #tpu.memory_space<smem>>
    %c9 = arith.constant 9 : index
    %9 = memref.load %arg2[%c9] : memref<10xf32, #tpu.memory_space<smem>>
    %c0_0 = arith.constant 0 : index
    %10 = memref.load %arg3[%c0_0] : memref<10xf32, #tpu.memory_space<smem>>
    %c1_1 = arith.constant 1 : index
    %11 = memref.load %arg3[%c1_1] : memref<10xf32, #tpu.memory_space<smem>>
    %c2_2 = arith.constant 2 : index
    %12 = memref.load %arg3[%c2_2] : memref<10xf32, #tpu.memory_space<smem>>
    %c3_3 = arith.constant 3 : index
    %13 = memref.load %arg3[%c3_3] : memref<10xf32, #tpu.memory_space<smem>>
    %c4_4 = arith.constant 4 : index
    %14 = memref.load %arg3[%c4_4] : memref<10xf32, #tpu.memory_space<smem>>
    %c5_5 = arith.constant 5 : index
    %15 = memref.load %arg3[%c5_5] : memref<10xf32, #tpu.memory_space<smem>>
    %c6_6 = arith.constant 6 : index
    %16 = memref.load %arg3[%c6_6] : memref<10xf32, #tpu.memory_space<smem>>
    %c7_7 = arith.constant 7 : index
    %17 = memref.load %arg3[%c7_7] : memref<10xf32, #tpu.memory_space<smem>>
    %c8_8 = arith.constant 8 : index
    %18 = memref.load %arg3[%c8_8] : memref<10xf32, #tpu.memory_space<smem>>
    %c9_9 = arith.constant 9 : index
    %19 = memref.load %arg3[%c9_9] : memref<10xf32, #tpu.memory_space<smem>>
    %c0_10 = arith.constant 0 : index
    %20 = memref.load %arg4[%c0_10] : memref<100xf32, #tpu.memory_space<smem>>
    %c1_11 = arith.constant 1 : index
    %21 = memref.load %arg4[%c1_11] : memref<100xf32, #tpu.memory_space<smem>>
    %c2_12 = arith.constant 2 : index
    %22 = memref.load %arg4[%c2_12] : memref<100xf32, #tpu.memory_space<smem>>
    %c3_13 = arith.constant 3 : index
    %23 = memref.load %arg4[%c3_13] : memref<100xf32, #tpu.memory_space<smem>>
    %c4_14 = arith.constant 4 : index
    %24 = memref.load %arg4[%c4_14] : memref<100xf32, #tpu.memory_space<smem>>
    %c5_15 = arith.constant 5 : index
    %25 = memref.load %arg4[%c5_15] : memref<100xf32, #tpu.memory_space<smem>>
    %c6_16 = arith.constant 6 : index
    %26 = memref.load %arg4[%c6_16] : memref<100xf32, #tpu.memory_space<smem>>
    %c7_17 = arith.constant 7 : index
    %27 = memref.load %arg4[%c7_17] : memref<100xf32, #tpu.memory_space<smem>>
    %c8_18 = arith.constant 8 : index
    %28 = memref.load %arg4[%c8_18] : memref<100xf32, #tpu.memory_space<smem>>
    %c9_19 = arith.constant 9 : index
    %29 = memref.load %arg4[%c9_19] : memref<100xf32, #tpu.memory_space<smem>>
    %c10 = arith.constant 10 : index
    %30 = memref.load %arg4[%c10] : memref<100xf32, #tpu.memory_space<smem>>
    %c11 = arith.constant 11 : index
    %31 = memref.load %arg4[%c11] : memref<100xf32, #tpu.memory_space<smem>>
    %c12 = arith.constant 12 : index
    %32 = memref.load %arg4[%c12] : memref<100xf32, #tpu.memory_space<smem>>
    %c13 = arith.constant 13 : index
    %33 = memref.load %arg4[%c13] : memref<100xf32, #tpu.memory_space<smem>>
    %c14 = arith.constant 14 : index
    %34 = memref.load %arg4[%c14] : memref<100xf32, #tpu.memory_space<smem>>
    %c15 = arith.constant 15 : index
    %35 = memref.load %arg4[%c15] : memref<100xf32, #tpu.memory_space<smem>>
    %c16 = arith.constant 16 : index
    %36 = memref.load %arg4[%c16] : memref<100xf32, #tpu.memory_space<smem>>
    %c17 = arith.constant 17 : index
    %37 = memref.load %arg4[%c17] : memref<100xf32, #tpu.memory_space<smem>>
    %c18 = arith.constant 18 : index
    %38 = memref.load %arg4[%c18] : memref<100xf32, #tpu.memory_space<smem>>
    %c19 = arith.constant 19 : index
    %39 = memref.load %arg4[%c19] : memref<100xf32, #tpu.memory_space<smem>>
    %c20 = arith.constant 20 : index
    %40 = memref.load %arg4[%c20] : memref<100xf32, #tpu.memory_space<smem>>
    %c21 = arith.constant 21 : index
    %41 = memref.load %arg4[%c21] : memref<100xf32, #tpu.memory_space<smem>>
    %c22 = arith.constant 22 : index
    %42 = memref.load %arg4[%c22] : memref<100xf32, #tpu.memory_space<smem>>
    %c23 = arith.constant 23 : index
    %43 = memref.load %arg4[%c23] : memref<100xf32, #tpu.memory_space<smem>>
    %c24 = arith.constant 24 : index
    %44 = memref.load %arg4[%c24] : memref<100xf32, #tpu.memory_space<smem>>
    %c25 = arith.constant 25 : index
    %45 = memref.load %arg4[%c25] : memref<100xf32, #tpu.memory_space<smem>>
    %c26 = arith.constant 26 : index
    %46 = memref.load %arg4[%c26] : memref<100xf32, #tpu.memory_space<smem>>
    %c27 = arith.constant 27 : index
    %47 = memref.load %arg4[%c27] : memref<100xf32, #tpu.memory_space<smem>>
    %c28 = arith.constant 28 : index
    %48 = memref.load %arg4[%c28] : memref<100xf32, #tpu.memory_space<smem>>
    %c29 = arith.constant 29 : index
    %49 = memref.load %arg4[%c29] : memref<100xf32, #tpu.memory_space<smem>>
    %c30 = arith.constant 30 : index
    %50 = memref.load %arg4[%c30] : memref<100xf32, #tpu.memory_space<smem>>
    %c31 = arith.constant 31 : index
    %51 = memref.load %arg4[%c31] : memref<100xf32, #tpu.memory_space<smem>>
    %c32 = arith.constant 32 : index
    %52 = memref.load %arg4[%c32] : memref<100xf32, #tpu.memory_space<smem>>
    %c33 = arith.constant 33 : index
    %53 = memref.load %arg4[%c33] : memref<100xf32, #tpu.memory_space<smem>>
    %c34 = arith.constant 34 : index
    %54 = memref.load %arg4[%c34] : memref<100xf32, #tpu.memory_space<smem>>
    %c35 = arith.constant 35 : index
    %55 = memref.load %arg4[%c35] : memref<100xf32, #tpu.memory_space<smem>>
    %c36 = arith.constant 36 : index
    %56 = memref.load %arg4[%c36] : memref<100xf32, #tpu.memory_space<smem>>
    %c37 = arith.constant 37 : index
    %57 = memref.load %arg4[%c37] : memref<100xf32, #tpu.memory_space<smem>>
    %c38 = arith.constant 38 : index
    %58 = memref.load %arg4[%c38] : memref<100xf32, #tpu.memory_space<smem>>
    %c39 = arith.constant 39 : index
    %59 = memref.load %arg4[%c39] : memref<100xf32, #tpu.memory_space<smem>>
    %c40 = arith.constant 40 : index
    %60 = memref.load %arg4[%c40] : memref<100xf32, #tpu.memory_space<smem>>
    %c41 = arith.constant 41 : index
    %61 = memref.load %arg4[%c41] : memref<100xf32, #tpu.memory_space<smem>>
    %c42 = arith.constant 42 : index
    %62 = memref.load %arg4[%c42] : memref<100xf32, #tpu.memory_space<smem>>
    %c43 = arith.constant 43 : index
    %63 = memref.load %arg4[%c43] : memref<100xf32, #tpu.memory_space<smem>>
    %c44 = arith.constant 44 : index
    %64 = memref.load %arg4[%c44] : memref<100xf32, #tpu.memory_space<smem>>
    %c45 = arith.constant 45 : index
    %65 = memref.load %arg4[%c45] : memref<100xf32, #tpu.memory_space<smem>>
    %c46 = arith.constant 46 : index
    %66 = memref.load %arg4[%c46] : memref<100xf32, #tpu.memory_space<smem>>
    %c47 = arith.constant 47 : index
    %67 = memref.load %arg4[%c47] : memref<100xf32, #tpu.memory_space<smem>>
    %c48 = arith.constant 48 : index
    %68 = memref.load %arg4[%c48] : memref<100xf32, #tpu.memory_space<smem>>
    %c49 = arith.constant 49 : index
    %69 = memref.load %arg4[%c49] : memref<100xf32, #tpu.memory_space<smem>>
    %c50 = arith.constant 50 : index
    %70 = memref.load %arg4[%c50] : memref<100xf32, #tpu.memory_space<smem>>
    %c51 = arith.constant 51 : index
    %71 = memref.load %arg4[%c51] : memref<100xf32, #tpu.memory_space<smem>>
    %c52 = arith.constant 52 : index
    %72 = memref.load %arg4[%c52] : memref<100xf32, #tpu.memory_space<smem>>
    %c53 = arith.constant 53 : index
    %73 = memref.load %arg4[%c53] : memref<100xf32, #tpu.memory_space<smem>>
    %c54 = arith.constant 54 : index
    %74 = memref.load %arg4[%c54] : memref<100xf32, #tpu.memory_space<smem>>
    %c55 = arith.constant 55 : index
    %75 = memref.load %arg4[%c55] : memref<100xf32, #tpu.memory_space<smem>>
    %c56 = arith.constant 56 : index
    %76 = memref.load %arg4[%c56] : memref<100xf32, #tpu.memory_space<smem>>
    %c57 = arith.constant 57 : index
    %77 = memref.load %arg4[%c57] : memref<100xf32, #tpu.memory_space<smem>>
    %c58 = arith.constant 58 : index
    %78 = memref.load %arg4[%c58] : memref<100xf32, #tpu.memory_space<smem>>
    %c59 = arith.constant 59 : index
    %79 = memref.load %arg4[%c59] : memref<100xf32, #tpu.memory_space<smem>>
    %c60 = arith.constant 60 : index
    %80 = memref.load %arg4[%c60] : memref<100xf32, #tpu.memory_space<smem>>
    %c61 = arith.constant 61 : index
    %81 = memref.load %arg4[%c61] : memref<100xf32, #tpu.memory_space<smem>>
    %c62 = arith.constant 62 : index
    %82 = memref.load %arg4[%c62] : memref<100xf32, #tpu.memory_space<smem>>
    %c63 = arith.constant 63 : index
    %83 = memref.load %arg4[%c63] : memref<100xf32, #tpu.memory_space<smem>>
    %c64 = arith.constant 64 : index
    %84 = memref.load %arg4[%c64] : memref<100xf32, #tpu.memory_space<smem>>
    %c65 = arith.constant 65 : index
    %85 = memref.load %arg4[%c65] : memref<100xf32, #tpu.memory_space<smem>>
    %c66 = arith.constant 66 : index
    %86 = memref.load %arg4[%c66] : memref<100xf32, #tpu.memory_space<smem>>
    %c67 = arith.constant 67 : index
    %87 = memref.load %arg4[%c67] : memref<100xf32, #tpu.memory_space<smem>>
    %c68 = arith.constant 68 : index
    %88 = memref.load %arg4[%c68] : memref<100xf32, #tpu.memory_space<smem>>
    %c69 = arith.constant 69 : index
    %89 = memref.load %arg4[%c69] : memref<100xf32, #tpu.memory_space<smem>>
    %c70 = arith.constant 70 : index
    %90 = memref.load %arg4[%c70] : memref<100xf32, #tpu.memory_space<smem>>
    %c71 = arith.constant 71 : index
    %91 = memref.load %arg4[%c71] : memref<100xf32, #tpu.memory_space<smem>>
    %c72 = arith.constant 72 : index
    %92 = memref.load %arg4[%c72] : memref<100xf32, #tpu.memory_space<smem>>
    %c73 = arith.constant 73 : index
    %93 = memref.load %arg4[%c73] : memref<100xf32, #tpu.memory_space<smem>>
    %c74 = arith.constant 74 : index
    %94 = memref.load %arg4[%c74] : memref<100xf32, #tpu.memory_space<smem>>
    %c75 = arith.constant 75 : index
    %95 = memref.load %arg4[%c75] : memref<100xf32, #tpu.memory_space<smem>>
    %c76 = arith.constant 76 : index
    %96 = memref.load %arg4[%c76] : memref<100xf32, #tpu.memory_space<smem>>
    %c77 = arith.constant 77 : index
    %97 = memref.load %arg4[%c77] : memref<100xf32, #tpu.memory_space<smem>>
    %c78 = arith.constant 78 : index
    %98 = memref.load %arg4[%c78] : memref<100xf32, #tpu.memory_space<smem>>
    %c79 = arith.constant 79 : index
    %99 = memref.load %arg4[%c79] : memref<100xf32, #tpu.memory_space<smem>>
    %c80 = arith.constant 80 : index
    %100 = memref.load %arg4[%c80] : memref<100xf32, #tpu.memory_space<smem>>
    %c81 = arith.constant 81 : index
    %101 = memref.load %arg4[%c81] : memref<100xf32, #tpu.memory_space<smem>>
    %c82 = arith.constant 82 : index
    %102 = memref.load %arg4[%c82] : memref<100xf32, #tpu.memory_space<smem>>
    %c83 = arith.constant 83 : index
    %103 = memref.load %arg4[%c83] : memref<100xf32, #tpu.memory_space<smem>>
    %c84 = arith.constant 84 : index
    %104 = memref.load %arg4[%c84] : memref<100xf32, #tpu.memory_space<smem>>
    %c85 = arith.constant 85 : index
    %105 = memref.load %arg4[%c85] : memref<100xf32, #tpu.memory_space<smem>>
    %c86 = arith.constant 86 : index
    %106 = memref.load %arg4[%c86] : memref<100xf32, #tpu.memory_space<smem>>
    %c87 = arith.constant 87 : index
    %107 = memref.load %arg4[%c87] : memref<100xf32, #tpu.memory_space<smem>>
    %c88 = arith.constant 88 : index
    %108 = memref.load %arg4[%c88] : memref<100xf32, #tpu.memory_space<smem>>
    %c89 = arith.constant 89 : index
    %109 = memref.load %arg4[%c89] : memref<100xf32, #tpu.memory_space<smem>>
    %c90 = arith.constant 90 : index
    %110 = memref.load %arg4[%c90] : memref<100xf32, #tpu.memory_space<smem>>
    %c91 = arith.constant 91 : index
    %111 = memref.load %arg4[%c91] : memref<100xf32, #tpu.memory_space<smem>>
    %c92 = arith.constant 92 : index
    %112 = memref.load %arg4[%c92] : memref<100xf32, #tpu.memory_space<smem>>
    %c93 = arith.constant 93 : index
    %113 = memref.load %arg4[%c93] : memref<100xf32, #tpu.memory_space<smem>>
    %c94 = arith.constant 94 : index
    %114 = memref.load %arg4[%c94] : memref<100xf32, #tpu.memory_space<smem>>
    %c95 = arith.constant 95 : index
    %115 = memref.load %arg4[%c95] : memref<100xf32, #tpu.memory_space<smem>>
    %c96 = arith.constant 96 : index
    %116 = memref.load %arg4[%c96] : memref<100xf32, #tpu.memory_space<smem>>
    %c97 = arith.constant 97 : index
    %117 = memref.load %arg4[%c97] : memref<100xf32, #tpu.memory_space<smem>>
    %c98 = arith.constant 98 : index
    %118 = memref.load %arg4[%c98] : memref<100xf32, #tpu.memory_space<smem>>
    %c99 = arith.constant 99 : index
    %119 = memref.load %arg4[%c99] : memref<100xf32, #tpu.memory_space<smem>>
    %c0_20 = arith.constant 0 : index
    %120 = memref.load %arg5[%c0_20] : memref<10xf32, #tpu.memory_space<smem>>
    %c1_21 = arith.constant 1 : index
    %121 = memref.load %arg5[%c1_21] : memref<10xf32, #tpu.memory_space<smem>>
    %c2_22 = arith.constant 2 : index
    %122 = memref.load %arg5[%c2_22] : memref<10xf32, #tpu.memory_space<smem>>
    %c3_23 = arith.constant 3 : index
    %123 = memref.load %arg5[%c3_23] : memref<10xf32, #tpu.memory_space<smem>>
    %c4_24 = arith.constant 4 : index
    %124 = memref.load %arg5[%c4_24] : memref<10xf32, #tpu.memory_space<smem>>
    %c5_25 = arith.constant 5 : index
    %125 = memref.load %arg5[%c5_25] : memref<10xf32, #tpu.memory_space<smem>>
    %c6_26 = arith.constant 6 : index
    %126 = memref.load %arg5[%c6_26] : memref<10xf32, #tpu.memory_space<smem>>
    %c7_27 = arith.constant 7 : index
    %127 = memref.load %arg5[%c7_27] : memref<10xf32, #tpu.memory_space<smem>>
    %c8_28 = arith.constant 8 : index
    %128 = memref.load %arg5[%c8_28] : memref<10xf32, #tpu.memory_space<smem>>
    %c9_29 = arith.constant 9 : index
    %129 = memref.load %arg5[%c9_29] : memref<10xf32, #tpu.memory_space<smem>>
    %c0_30 = arith.constant 0 : index
    %130 = memref.load %arg6[%c0_30] : memref<10xf32, #tpu.memory_space<smem>>
    %c1_31 = arith.constant 1 : index
    %131 = memref.load %arg6[%c1_31] : memref<10xf32, #tpu.memory_space<smem>>
    %c2_32 = arith.constant 2 : index
    %132 = memref.load %arg6[%c2_32] : memref<10xf32, #tpu.memory_space<smem>>
    %c3_33 = arith.constant 3 : index
    %133 = memref.load %arg6[%c3_33] : memref<10xf32, #tpu.memory_space<smem>>
    %c4_34 = arith.constant 4 : index
    %134 = memref.load %arg6[%c4_34] : memref<10xf32, #tpu.memory_space<smem>>
    %c5_35 = arith.constant 5 : index
    %135 = memref.load %arg6[%c5_35] : memref<10xf32, #tpu.memory_space<smem>>
    %c6_36 = arith.constant 6 : index
    %136 = memref.load %arg6[%c6_36] : memref<10xf32, #tpu.memory_space<smem>>
    %c7_37 = arith.constant 7 : index
    %137 = memref.load %arg6[%c7_37] : memref<10xf32, #tpu.memory_space<smem>>
    %c8_38 = arith.constant 8 : index
    %138 = memref.load %arg6[%c8_38] : memref<10xf32, #tpu.memory_space<smem>>
    %c9_39 = arith.constant 9 : index
    %139 = memref.load %arg6[%c9_39] : memref<10xf32, #tpu.memory_space<smem>>
    %c0_40 = arith.constant 0 : index
    %140 = memref.load %arg7[%c0_40] : memref<1xf32, #tpu.memory_space<smem>>
    %c0_41 = arith.constant 0 : index
    %141 = memref.load %arg8[%c0_41] : memref<10xf32, #tpu.memory_space<smem>>
    %c1_42 = arith.constant 1 : index
    %142 = memref.load %arg8[%c1_42] : memref<10xf32, #tpu.memory_space<smem>>
    %c2_43 = arith.constant 2 : index
    %143 = memref.load %arg8[%c2_43] : memref<10xf32, #tpu.memory_space<smem>>
    %c3_44 = arith.constant 3 : index
    %144 = memref.load %arg8[%c3_44] : memref<10xf32, #tpu.memory_space<smem>>
    %c4_45 = arith.constant 4 : index
    %145 = memref.load %arg8[%c4_45] : memref<10xf32, #tpu.memory_space<smem>>
    %c5_46 = arith.constant 5 : index
    %146 = memref.load %arg8[%c5_46] : memref<10xf32, #tpu.memory_space<smem>>
    %c6_47 = arith.constant 6 : index
    %147 = memref.load %arg8[%c6_47] : memref<10xf32, #tpu.memory_space<smem>>
    %c7_48 = arith.constant 7 : index
    %148 = memref.load %arg8[%c7_48] : memref<10xf32, #tpu.memory_space<smem>>
    %c8_49 = arith.constant 8 : index
    %149 = memref.load %arg8[%c8_49] : memref<10xf32, #tpu.memory_space<smem>>
    %c9_50 = arith.constant 9 : index
    %150 = memref.load %arg8[%c9_50] : memref<10xf32, #tpu.memory_space<smem>>
    %c0_51 = arith.constant 0 : index
    %151 = memref.load %arg9[%c0_51] : memref<1xf32, #tpu.memory_space<smem>>
    %c0_52 = arith.constant 0 : index
    %152 = memref.load %arg10[%c0_52] : memref<10xf32, #tpu.memory_space<smem>>
    %c1_53 = arith.constant 1 : index
    %153 = memref.load %arg10[%c1_53] : memref<10xf32, #tpu.memory_space<smem>>
    %c2_54 = arith.constant 2 : index
    %154 = memref.load %arg10[%c2_54] : memref<10xf32, #tpu.memory_space<smem>>
    %c3_55 = arith.constant 3 : index
    %155 = memref.load %arg10[%c3_55] : memref<10xf32, #tpu.memory_space<smem>>
    %c4_56 = arith.constant 4 : index
    %156 = memref.load %arg10[%c4_56] : memref<10xf32, #tpu.memory_space<smem>>
    %c5_57 = arith.constant 5 : index
    %157 = memref.load %arg10[%c5_57] : memref<10xf32, #tpu.memory_space<smem>>
    %c6_58 = arith.constant 6 : index
    %158 = memref.load %arg10[%c6_58] : memref<10xf32, #tpu.memory_space<smem>>
    %c7_59 = arith.constant 7 : index
    %159 = memref.load %arg10[%c7_59] : memref<10xf32, #tpu.memory_space<smem>>
    %c8_60 = arith.constant 8 : index
    %160 = memref.load %arg10[%c8_60] : memref<10xf32, #tpu.memory_space<smem>>
    %c9_61 = arith.constant 9 : index
    %161 = memref.load %arg10[%c9_61] : memref<10xf32, #tpu.memory_space<smem>>
    %c0_62 = arith.constant 0 : index
    %162 = memref.load %arg11[%c0_62] : memref<1xf32, #tpu.memory_space<smem>>
    %c0_63 = arith.constant 0 : index
    %163 = memref.load %arg12[%c0_63] : memref<10xf32, #tpu.memory_space<smem>>
    %c1_64 = arith.constant 1 : index
    %164 = memref.load %arg12[%c1_64] : memref<10xf32, #tpu.memory_space<smem>>
    %c2_65 = arith.constant 2 : index
    %165 = memref.load %arg12[%c2_65] : memref<10xf32, #tpu.memory_space<smem>>
    %c3_66 = arith.constant 3 : index
    %166 = memref.load %arg12[%c3_66] : memref<10xf32, #tpu.memory_space<smem>>
    %c4_67 = arith.constant 4 : index
    %167 = memref.load %arg12[%c4_67] : memref<10xf32, #tpu.memory_space<smem>>
    %c5_68 = arith.constant 5 : index
    %168 = memref.load %arg12[%c5_68] : memref<10xf32, #tpu.memory_space<smem>>
    %c6_69 = arith.constant 6 : index
    %169 = memref.load %arg12[%c6_69] : memref<10xf32, #tpu.memory_space<smem>>
    %c7_70 = arith.constant 7 : index
    %170 = memref.load %arg12[%c7_70] : memref<10xf32, #tpu.memory_space<smem>>
    %c8_71 = arith.constant 8 : index
    %171 = memref.load %arg12[%c8_71] : memref<10xf32, #tpu.memory_space<smem>>
    %c9_72 = arith.constant 9 : index
    %172 = memref.load %arg12[%c9_72] : memref<10xf32, #tpu.memory_space<smem>>
    %c0_73 = arith.constant 0 : index
    %173 = memref.load %arg13[%c0_73] : memref<1xf32, #tpu.memory_space<smem>>
    %c0_i32 = arith.constant 0 : i32
    %c16_i32 = arith.constant 16 : i32
    %174 = arith.muli %c0_i32, %c16_i32 : i32
    %175 = tpu.assume_multiple %174, 16 : i32
    %176 = arith.index_cast %175 : i32 to index
    %c0_74 = arith.constant 0 : index
    %177 = vector.load %arg1[%176, %c0_74] : memref<16x128xf32, #tpu.memory_space<vmem>>, vector<16x128xf32>
    %178 = vector.broadcast %0 : f32 to vector<16x128xf32>
    %179 = arith.mulf %177, %178 : vector<16x128xf32>
    %180 = vector.broadcast %10 : f32 to vector<16x128xf32>
    %181 = arith.addf %179, %180 : vector<16x128xf32>
    %cst = arith.constant 0.000000e+00 : f32
    %182 = vector.broadcast %cst : f32 to vector<16x128xf32>
    %183 = arith.maximumf %181, %182 : vector<16x128xf32>
    %184 = math.absf %181 : vector<16x128xf32>
    %cst_75 = arith.constant 0.000000e+00 : f32
    %185 = vector.broadcast %cst_75 : f32 to vector<16x128xf32>
    %186 = arith.subf %185, %184 : vector<16x128xf32>
    %187 = math.exp %186 : vector<16x128xf32>
    %188 = math.log1p %187 : vector<16x128xf32>
    %189 = arith.addf %183, %188 : vector<16x128xf32>
    %190 = vector.broadcast %1 : f32 to vector<16x128xf32>
    %191 = arith.mulf %177, %190 : vector<16x128xf32>
    %192 = vector.broadcast %11 : f32 to vector<16x128xf32>
    %193 = arith.addf %191, %192 : vector<16x128xf32>
    %cst_76 = arith.constant 0.000000e+00 : f32
    %194 = vector.broadcast %cst_76 : f32 to vector<16x128xf32>
    %195 = arith.maximumf %193, %194 : vector<16x128xf32>
    %196 = math.absf %193 : vector<16x128xf32>
    %cst_77 = arith.constant 0.000000e+00 : f32
    %197 = vector.broadcast %cst_77 : f32 to vector<16x128xf32>
    %198 = arith.subf %197, %196 : vector<16x128xf32>
    %199 = math.exp %198 : vector<16x128xf32>
    %200 = math.log1p %199 : vector<16x128xf32>
    %201 = arith.addf %195, %200 : vector<16x128xf32>
    %202 = vector.broadcast %2 : f32 to vector<16x128xf32>
    %203 = arith.mulf %177, %202 : vector<16x128xf32>
    %204 = vector.broadcast %12 : f32 to vector<16x128xf32>
    %205 = arith.addf %203, %204 : vector<16x128xf32>
    %cst_78 = arith.constant 0.000000e+00 : f32
    %206 = vector.broadcast %cst_78 : f32 to vector<16x128xf32>
    %207 = arith.maximumf %205, %206 : vector<16x128xf32>
    %208 = math.absf %205 : vector<16x128xf32>
    %cst_79 = arith.constant 0.000000e+00 : f32
    %209 = vector.broadcast %cst_79 : f32 to vector<16x128xf32>
    %210 = arith.subf %209, %208 : vector<16x128xf32>
    %211 = math.exp %210 : vector<16x128xf32>
    %212 = math.log1p %211 : vector<16x128xf32>
    %213 = arith.addf %207, %212 : vector<16x128xf32>
    %214 = vector.broadcast %3 : f32 to vector<16x128xf32>
    %215 = arith.mulf %177, %214 : vector<16x128xf32>
    %216 = vector.broadcast %13 : f32 to vector<16x128xf32>
    %217 = arith.addf %215, %216 : vector<16x128xf32>
    %cst_80 = arith.constant 0.000000e+00 : f32
    %218 = vector.broadcast %cst_80 : f32 to vector<16x128xf32>
    %219 = arith.maximumf %217, %218 : vector<16x128xf32>
    %220 = math.absf %217 : vector<16x128xf32>
    %cst_81 = arith.constant 0.000000e+00 : f32
    %221 = vector.broadcast %cst_81 : f32 to vector<16x128xf32>
    %222 = arith.subf %221, %220 : vector<16x128xf32>
    %223 = math.exp %222 : vector<16x128xf32>
    %224 = math.log1p %223 : vector<16x128xf32>
    %225 = arith.addf %219, %224 : vector<16x128xf32>
    %226 = vector.broadcast %4 : f32 to vector<16x128xf32>
    %227 = arith.mulf %177, %226 : vector<16x128xf32>
    %228 = vector.broadcast %14 : f32 to vector<16x128xf32>
    %229 = arith.addf %227, %228 : vector<16x128xf32>
    %cst_82 = arith.constant 0.000000e+00 : f32
    %230 = vector.broadcast %cst_82 : f32 to vector<16x128xf32>
    %231 = arith.maximumf %229, %230 : vector<16x128xf32>
    %232 = math.absf %229 : vector<16x128xf32>
    %cst_83 = arith.constant 0.000000e+00 : f32
    %233 = vector.broadcast %cst_83 : f32 to vector<16x128xf32>
    %234 = arith.subf %233, %232 : vector<16x128xf32>
    %235 = math.exp %234 : vector<16x128xf32>
    %236 = math.log1p %235 : vector<16x128xf32>
    %237 = arith.addf %231, %236 : vector<16x128xf32>
    %238 = vector.broadcast %5 : f32 to vector<16x128xf32>
    %239 = arith.mulf %177, %238 : vector<16x128xf32>
    %240 = vector.broadcast %15 : f32 to vector<16x128xf32>
    %241 = arith.addf %239, %240 : vector<16x128xf32>
    %cst_84 = arith.constant 0.000000e+00 : f32
    %242 = vector.broadcast %cst_84 : f32 to vector<16x128xf32>
    %243 = arith.maximumf %241, %242 : vector<16x128xf32>
    %244 = math.absf %241 : vector<16x128xf32>
    %cst_85 = arith.constant 0.000000e+00 : f32
    %245 = vector.broadcast %cst_85 : f32 to vector<16x128xf32>
    %246 = arith.subf %245, %244 : vector<16x128xf32>
    %247 = math.exp %246 : vector<16x128xf32>
    %248 = math.log1p %247 : vector<16x128xf32>
    %249 = arith.addf %243, %248 : vector<16x128xf32>
    %250 = vector.broadcast %6 : f32 to vector<16x128xf32>
    %251 = arith.mulf %177, %250 : vector<16x128xf32>
    %252 = vector.broadcast %16 : f32 to vector<16x128xf32>
    %253 = arith.addf %251, %252 : vector<16x128xf32>
    %cst_86 = arith.constant 0.000000e+00 : f32
    %254 = vector.broadcast %cst_86 : f32 to vector<16x128xf32>
    %255 = arith.maximumf %253, %254 : vector<16x128xf32>
    %256 = math.absf %253 : vector<16x128xf32>
    %cst_87 = arith.constant 0.000000e+00 : f32
    %257 = vector.broadcast %cst_87 : f32 to vector<16x128xf32>
    %258 = arith.subf %257, %256 : vector<16x128xf32>
    %259 = math.exp %258 : vector<16x128xf32>
    %260 = math.log1p %259 : vector<16x128xf32>
    %261 = arith.addf %255, %260 : vector<16x128xf32>
    %262 = vector.broadcast %7 : f32 to vector<16x128xf32>
    %263 = arith.mulf %177, %262 : vector<16x128xf32>
    %264 = vector.broadcast %17 : f32 to vector<16x128xf32>
    %265 = arith.addf %263, %264 : vector<16x128xf32>
    %cst_88 = arith.constant 0.000000e+00 : f32
    %266 = vector.broadcast %cst_88 : f32 to vector<16x128xf32>
    %267 = arith.maximumf %265, %266 : vector<16x128xf32>
    %268 = math.absf %265 : vector<16x128xf32>
    %cst_89 = arith.constant 0.000000e+00 : f32
    %269 = vector.broadcast %cst_89 : f32 to vector<16x128xf32>
    %270 = arith.subf %269, %268 : vector<16x128xf32>
    %271 = math.exp %270 : vector<16x128xf32>
    %272 = math.log1p %271 : vector<16x128xf32>
    %273 = arith.addf %267, %272 : vector<16x128xf32>
    %274 = vector.broadcast %8 : f32 to vector<16x128xf32>
    %275 = arith.mulf %177, %274 : vector<16x128xf32>
    %276 = vector.broadcast %18 : f32 to vector<16x128xf32>
    %277 = arith.addf %275, %276 : vector<16x128xf32>
    %cst_90 = arith.constant 0.000000e+00 : f32
    %278 = vector.broadcast %cst_90 : f32 to vector<16x128xf32>
    %279 = arith.maximumf %277, %278 : vector<16x128xf32>
    %280 = math.absf %277 : vector<16x128xf32>
    %cst_91 = arith.constant 0.000000e+00 : f32
    %281 = vector.broadcast %cst_91 : f32 to vector<16x128xf32>
    %282 = arith.subf %281, %280 : vector<16x128xf32>
    %283 = math.exp %282 : vector<16x128xf32>
    %284 = math.log1p %283 : vector<16x128xf32>
    %285 = arith.addf %279, %284 : vector<16x128xf32>
    %286 = vector.broadcast %9 : f32 to vector<16x128xf32>
    %287 = arith.mulf %177, %286 : vector<16x128xf32>
    %288 = vector.broadcast %19 : f32 to vector<16x128xf32>
    %289 = arith.addf %287, %288 : vector<16x128xf32>
    %cst_92 = arith.constant 0.000000e+00 : f32
    %290 = vector.broadcast %cst_92 : f32 to vector<16x128xf32>
    %291 = arith.maximumf %289, %290 : vector<16x128xf32>
    %292 = math.absf %289 : vector<16x128xf32>
    %cst_93 = arith.constant 0.000000e+00 : f32
    %293 = vector.broadcast %cst_93 : f32 to vector<16x128xf32>
    %294 = arith.subf %293, %292 : vector<16x128xf32>
    %295 = math.exp %294 : vector<16x128xf32>
    %296 = math.log1p %295 : vector<16x128xf32>
    %297 = arith.addf %291, %296 : vector<16x128xf32>
    %298 = vector.broadcast %20 : f32 to vector<16x128xf32>
    %299 = arith.mulf %189, %298 : vector<16x128xf32>
    %300 = vector.broadcast %30 : f32 to vector<16x128xf32>
    %301 = arith.mulf %201, %300 : vector<16x128xf32>
    %302 = vector.broadcast %40 : f32 to vector<16x128xf32>
    %303 = arith.mulf %213, %302 : vector<16x128xf32>
    %304 = vector.broadcast %50 : f32 to vector<16x128xf32>
    %305 = arith.mulf %225, %304 : vector<16x128xf32>
    %306 = vector.broadcast %60 : f32 to vector<16x128xf32>
    %307 = arith.mulf %237, %306 : vector<16x128xf32>
    %308 = vector.broadcast %70 : f32 to vector<16x128xf32>
    %309 = arith.mulf %249, %308 : vector<16x128xf32>
    %310 = vector.broadcast %80 : f32 to vector<16x128xf32>
    %311 = arith.mulf %261, %310 : vector<16x128xf32>
    %312 = vector.broadcast %90 : f32 to vector<16x128xf32>
    %313 = arith.mulf %273, %312 : vector<16x128xf32>
    %314 = vector.broadcast %100 : f32 to vector<16x128xf32>
    %315 = arith.mulf %285, %314 : vector<16x128xf32>
    %316 = vector.broadcast %110 : f32 to vector<16x128xf32>
    %317 = arith.mulf %297, %316 : vector<16x128xf32>
    %318 = arith.addf %299, %301 : vector<16x128xf32>
    %319 = arith.addf %303, %305 : vector<16x128xf32>
    %320 = arith.addf %307, %309 : vector<16x128xf32>
    %321 = arith.addf %311, %313 : vector<16x128xf32>
    %322 = arith.addf %315, %317 : vector<16x128xf32>
    %323 = arith.addf %318, %319 : vector<16x128xf32>
    %324 = arith.addf %320, %321 : vector<16x128xf32>
    %325 = arith.addf %323, %324 : vector<16x128xf32>
    %326 = arith.addf %325, %322 : vector<16x128xf32>
    %327 = vector.broadcast %120 : f32 to vector<16x128xf32>
    %328 = arith.addf %326, %327 : vector<16x128xf32>
    %cst_94 = arith.constant 0.000000e+00 : f32
    %329 = vector.broadcast %cst_94 : f32 to vector<16x128xf32>
    %330 = arith.maximumf %328, %329 : vector<16x128xf32>
    %331 = math.absf %328 : vector<16x128xf32>
    %cst_95 = arith.constant 0.000000e+00 : f32
    %332 = vector.broadcast %cst_95 : f32 to vector<16x128xf32>
    %333 = arith.subf %332, %331 : vector<16x128xf32>
    %334 = math.exp %333 : vector<16x128xf32>
    %335 = math.log1p %334 : vector<16x128xf32>
    %336 = arith.addf %330, %335 : vector<16x128xf32>
    %337 = vector.broadcast %21 : f32 to vector<16x128xf32>
    %338 = arith.mulf %189, %337 : vector<16x128xf32>
    %339 = vector.broadcast %31 : f32 to vector<16x128xf32>
    %340 = arith.mulf %201, %339 : vector<16x128xf32>
    %341 = vector.broadcast %41 : f32 to vector<16x128xf32>
    %342 = arith.mulf %213, %341 : vector<16x128xf32>
    %343 = vector.broadcast %51 : f32 to vector<16x128xf32>
    %344 = arith.mulf %225, %343 : vector<16x128xf32>
    %345 = vector.broadcast %61 : f32 to vector<16x128xf32>
    %346 = arith.mulf %237, %345 : vector<16x128xf32>
    %347 = vector.broadcast %71 : f32 to vector<16x128xf32>
    %348 = arith.mulf %249, %347 : vector<16x128xf32>
    %349 = vector.broadcast %81 : f32 to vector<16x128xf32>
    %350 = arith.mulf %261, %349 : vector<16x128xf32>
    %351 = vector.broadcast %91 : f32 to vector<16x128xf32>
    %352 = arith.mulf %273, %351 : vector<16x128xf32>
    %353 = vector.broadcast %101 : f32 to vector<16x128xf32>
    %354 = arith.mulf %285, %353 : vector<16x128xf32>
    %355 = vector.broadcast %111 : f32 to vector<16x128xf32>
    %356 = arith.mulf %297, %355 : vector<16x128xf32>
    %357 = arith.addf %338, %340 : vector<16x128xf32>
    %358 = arith.addf %342, %344 : vector<16x128xf32>
    %359 = arith.addf %346, %348 : vector<16x128xf32>
    %360 = arith.addf %350, %352 : vector<16x128xf32>
    %361 = arith.addf %354, %356 : vector<16x128xf32>
    %362 = arith.addf %357, %358 : vector<16x128xf32>
    %363 = arith.addf %359, %360 : vector<16x128xf32>
    %364 = arith.addf %362, %363 : vector<16x128xf32>
    %365 = arith.addf %364, %361 : vector<16x128xf32>
    %366 = vector.broadcast %121 : f32 to vector<16x128xf32>
    %367 = arith.addf %365, %366 : vector<16x128xf32>
    %cst_96 = arith.constant 0.000000e+00 : f32
    %368 = vector.broadcast %cst_96 : f32 to vector<16x128xf32>
    %369 = arith.maximumf %367, %368 : vector<16x128xf32>
    %370 = math.absf %367 : vector<16x128xf32>
    %cst_97 = arith.constant 0.000000e+00 : f32
    %371 = vector.broadcast %cst_97 : f32 to vector<16x128xf32>
    %372 = arith.subf %371, %370 : vector<16x128xf32>
    %373 = math.exp %372 : vector<16x128xf32>
    %374 = math.log1p %373 : vector<16x128xf32>
    %375 = arith.addf %369, %374 : vector<16x128xf32>
    %376 = vector.broadcast %22 : f32 to vector<16x128xf32>
    %377 = arith.mulf %189, %376 : vector<16x128xf32>
    %378 = vector.broadcast %32 : f32 to vector<16x128xf32>
    %379 = arith.mulf %201, %378 : vector<16x128xf32>
    %380 = vector.broadcast %42 : f32 to vector<16x128xf32>
    %381 = arith.mulf %213, %380 : vector<16x128xf32>
    %382 = vector.broadcast %52 : f32 to vector<16x128xf32>
    %383 = arith.mulf %225, %382 : vector<16x128xf32>
    %384 = vector.broadcast %62 : f32 to vector<16x128xf32>
    %385 = arith.mulf %237, %384 : vector<16x128xf32>
    %386 = vector.broadcast %72 : f32 to vector<16x128xf32>
    %387 = arith.mulf %249, %386 : vector<16x128xf32>
    %388 = vector.broadcast %82 : f32 to vector<16x128xf32>
    %389 = arith.mulf %261, %388 : vector<16x128xf32>
    %390 = vector.broadcast %92 : f32 to vector<16x128xf32>
    %391 = arith.mulf %273, %390 : vector<16x128xf32>
    %392 = vector.broadcast %102 : f32 to vector<16x128xf32>
    %393 = arith.mulf %285, %392 : vector<16x128xf32>
    %394 = vector.broadcast %112 : f32 to vector<16x128xf32>
    %395 = arith.mulf %297, %394 : vector<16x128xf32>
    %396 = arith.addf %377, %379 : vector<16x128xf32>
    %397 = arith.addf %381, %383 : vector<16x128xf32>
    %398 = arith.addf %385, %387 : vector<16x128xf32>
    %399 = arith.addf %389, %391 : vector<16x128xf32>
    %400 = arith.addf %393, %395 : vector<16x128xf32>
    %401 = arith.addf %396, %397 : vector<16x128xf32>
    %402 = arith.addf %398, %399 : vector<16x128xf32>
    %403 = arith.addf %401, %402 : vector<16x128xf32>
    %404 = arith.addf %403, %400 : vector<16x128xf32>
    %405 = vector.broadcast %122 : f32 to vector<16x128xf32>
    %406 = arith.addf %404, %405 : vector<16x128xf32>
    %cst_98 = arith.constant 0.000000e+00 : f32
    %407 = vector.broadcast %cst_98 : f32 to vector<16x128xf32>
    %408 = arith.maximumf %406, %407 : vector<16x128xf32>
    %409 = math.absf %406 : vector<16x128xf32>
    %cst_99 = arith.constant 0.000000e+00 : f32
    %410 = vector.broadcast %cst_99 : f32 to vector<16x128xf32>
    %411 = arith.subf %410, %409 : vector<16x128xf32>
    %412 = math.exp %411 : vector<16x128xf32>
    %413 = math.log1p %412 : vector<16x128xf32>
    %414 = arith.addf %408, %413 : vector<16x128xf32>
    %415 = vector.broadcast %23 : f32 to vector<16x128xf32>
    %416 = arith.mulf %189, %415 : vector<16x128xf32>
    %417 = vector.broadcast %33 : f32 to vector<16x128xf32>
    %418 = arith.mulf %201, %417 : vector<16x128xf32>
    %419 = vector.broadcast %43 : f32 to vector<16x128xf32>
    %420 = arith.mulf %213, %419 : vector<16x128xf32>
    %421 = vector.broadcast %53 : f32 to vector<16x128xf32>
    %422 = arith.mulf %225, %421 : vector<16x128xf32>
    %423 = vector.broadcast %63 : f32 to vector<16x128xf32>
    %424 = arith.mulf %237, %423 : vector<16x128xf32>
    %425 = vector.broadcast %73 : f32 to vector<16x128xf32>
    %426 = arith.mulf %249, %425 : vector<16x128xf32>
    %427 = vector.broadcast %83 : f32 to vector<16x128xf32>
    %428 = arith.mulf %261, %427 : vector<16x128xf32>
    %429 = vector.broadcast %93 : f32 to vector<16x128xf32>
    %430 = arith.mulf %273, %429 : vector<16x128xf32>
    %431 = vector.broadcast %103 : f32 to vector<16x128xf32>
    %432 = arith.mulf %285, %431 : vector<16x128xf32>
    %433 = vector.broadcast %113 : f32 to vector<16x128xf32>
    %434 = arith.mulf %297, %433 : vector<16x128xf32>
    %435 = arith.addf %416, %418 : vector<16x128xf32>
    %436 = arith.addf %420, %422 : vector<16x128xf32>
    %437 = arith.addf %424, %426 : vector<16x128xf32>
    %438 = arith.addf %428, %430 : vector<16x128xf32>
    %439 = arith.addf %432, %434 : vector<16x128xf32>
    %440 = arith.addf %435, %436 : vector<16x128xf32>
    %441 = arith.addf %437, %438 : vector<16x128xf32>
    %442 = arith.addf %440, %441 : vector<16x128xf32>
    %443 = arith.addf %442, %439 : vector<16x128xf32>
    %444 = vector.broadcast %123 : f32 to vector<16x128xf32>
    %445 = arith.addf %443, %444 : vector<16x128xf32>
    %cst_100 = arith.constant 0.000000e+00 : f32
    %446 = vector.broadcast %cst_100 : f32 to vector<16x128xf32>
    %447 = arith.maximumf %445, %446 : vector<16x128xf32>
    %448 = math.absf %445 : vector<16x128xf32>
    %cst_101 = arith.constant 0.000000e+00 : f32
    %449 = vector.broadcast %cst_101 : f32 to vector<16x128xf32>
    %450 = arith.subf %449, %448 : vector<16x128xf32>
    %451 = math.exp %450 : vector<16x128xf32>
    %452 = math.log1p %451 : vector<16x128xf32>
    %453 = arith.addf %447, %452 : vector<16x128xf32>
    %454 = vector.broadcast %24 : f32 to vector<16x128xf32>
    %455 = arith.mulf %189, %454 : vector<16x128xf32>
    %456 = vector.broadcast %34 : f32 to vector<16x128xf32>
    %457 = arith.mulf %201, %456 : vector<16x128xf32>
    %458 = vector.broadcast %44 : f32 to vector<16x128xf32>
    %459 = arith.mulf %213, %458 : vector<16x128xf32>
    %460 = vector.broadcast %54 : f32 to vector<16x128xf32>
    %461 = arith.mulf %225, %460 : vector<16x128xf32>
    %462 = vector.broadcast %64 : f32 to vector<16x128xf32>
    %463 = arith.mulf %237, %462 : vector<16x128xf32>
    %464 = vector.broadcast %74 : f32 to vector<16x128xf32>
    %465 = arith.mulf %249, %464 : vector<16x128xf32>
    %466 = vector.broadcast %84 : f32 to vector<16x128xf32>
    %467 = arith.mulf %261, %466 : vector<16x128xf32>
    %468 = vector.broadcast %94 : f32 to vector<16x128xf32>
    %469 = arith.mulf %273, %468 : vector<16x128xf32>
    %470 = vector.broadcast %104 : f32 to vector<16x128xf32>
    %471 = arith.mulf %285, %470 : vector<16x128xf32>
    %472 = vector.broadcast %114 : f32 to vector<16x128xf32>
    %473 = arith.mulf %297, %472 : vector<16x128xf32>
    %474 = arith.addf %455, %457 : vector<16x128xf32>
    %475 = arith.addf %459, %461 : vector<16x128xf32>
    %476 = arith.addf %463, %465 : vector<16x128xf32>
    %477 = arith.addf %467, %469 : vector<16x128xf32>
    %478 = arith.addf %471, %473 : vector<16x128xf32>
    %479 = arith.addf %474, %475 : vector<16x128xf32>
    %480 = arith.addf %476, %477 : vector<16x128xf32>
    %481 = arith.addf %479, %480 : vector<16x128xf32>
    %482 = arith.addf %481, %478 : vector<16x128xf32>
    %483 = vector.broadcast %124 : f32 to vector<16x128xf32>
    %484 = arith.addf %482, %483 : vector<16x128xf32>
    %cst_102 = arith.constant 0.000000e+00 : f32
    %485 = vector.broadcast %cst_102 : f32 to vector<16x128xf32>
    %486 = arith.maximumf %484, %485 : vector<16x128xf32>
    %487 = math.absf %484 : vector<16x128xf32>
    %cst_103 = arith.constant 0.000000e+00 : f32
    %488 = vector.broadcast %cst_103 : f32 to vector<16x128xf32>
    %489 = arith.subf %488, %487 : vector<16x128xf32>
    %490 = math.exp %489 : vector<16x128xf32>
    %491 = math.log1p %490 : vector<16x128xf32>
    %492 = arith.addf %486, %491 : vector<16x128xf32>
    %493 = vector.broadcast %25 : f32 to vector<16x128xf32>
    %494 = arith.mulf %189, %493 : vector<16x128xf32>
    %495 = vector.broadcast %35 : f32 to vector<16x128xf32>
    %496 = arith.mulf %201, %495 : vector<16x128xf32>
    %497 = vector.broadcast %45 : f32 to vector<16x128xf32>
    %498 = arith.mulf %213, %497 : vector<16x128xf32>
    %499 = vector.broadcast %55 : f32 to vector<16x128xf32>
    %500 = arith.mulf %225, %499 : vector<16x128xf32>
    %501 = vector.broadcast %65 : f32 to vector<16x128xf32>
    %502 = arith.mulf %237, %501 : vector<16x128xf32>
    %503 = vector.broadcast %75 : f32 to vector<16x128xf32>
    %504 = arith.mulf %249, %503 : vector<16x128xf32>
    %505 = vector.broadcast %85 : f32 to vector<16x128xf32>
    %506 = arith.mulf %261, %505 : vector<16x128xf32>
    %507 = vector.broadcast %95 : f32 to vector<16x128xf32>
    %508 = arith.mulf %273, %507 : vector<16x128xf32>
    %509 = vector.broadcast %105 : f32 to vector<16x128xf32>
    %510 = arith.mulf %285, %509 : vector<16x128xf32>
    %511 = vector.broadcast %115 : f32 to vector<16x128xf32>
    %512 = arith.mulf %297, %511 : vector<16x128xf32>
    %513 = arith.addf %494, %496 : vector<16x128xf32>
    %514 = arith.addf %498, %500 : vector<16x128xf32>
    %515 = arith.addf %502, %504 : vector<16x128xf32>
    %516 = arith.addf %506, %508 : vector<16x128xf32>
    %517 = arith.addf %510, %512 : vector<16x128xf32>
    %518 = arith.addf %513, %514 : vector<16x128xf32>
    %519 = arith.addf %515, %516 : vector<16x128xf32>
    %520 = arith.addf %518, %519 : vector<16x128xf32>
    %521 = arith.addf %520, %517 : vector<16x128xf32>
    %522 = vector.broadcast %125 : f32 to vector<16x128xf32>
    %523 = arith.addf %521, %522 : vector<16x128xf32>
    %cst_104 = arith.constant 0.000000e+00 : f32
    %524 = vector.broadcast %cst_104 : f32 to vector<16x128xf32>
    %525 = arith.maximumf %523, %524 : vector<16x128xf32>
    %526 = math.absf %523 : vector<16x128xf32>
    %cst_105 = arith.constant 0.000000e+00 : f32
    %527 = vector.broadcast %cst_105 : f32 to vector<16x128xf32>
    %528 = arith.subf %527, %526 : vector<16x128xf32>
    %529 = math.exp %528 : vector<16x128xf32>
    %530 = math.log1p %529 : vector<16x128xf32>
    %531 = arith.addf %525, %530 : vector<16x128xf32>
    %532 = vector.broadcast %26 : f32 to vector<16x128xf32>
    %533 = arith.mulf %189, %532 : vector<16x128xf32>
    %534 = vector.broadcast %36 : f32 to vector<16x128xf32>
    %535 = arith.mulf %201, %534 : vector<16x128xf32>
    %536 = vector.broadcast %46 : f32 to vector<16x128xf32>
    %537 = arith.mulf %213, %536 : vector<16x128xf32>
    %538 = vector.broadcast %56 : f32 to vector<16x128xf32>
    %539 = arith.mulf %225, %538 : vector<16x128xf32>
    %540 = vector.broadcast %66 : f32 to vector<16x128xf32>
    %541 = arith.mulf %237, %540 : vector<16x128xf32>
    %542 = vector.broadcast %76 : f32 to vector<16x128xf32>
    %543 = arith.mulf %249, %542 : vector<16x128xf32>
    %544 = vector.broadcast %86 : f32 to vector<16x128xf32>
    %545 = arith.mulf %261, %544 : vector<16x128xf32>
    %546 = vector.broadcast %96 : f32 to vector<16x128xf32>
    %547 = arith.mulf %273, %546 : vector<16x128xf32>
    %548 = vector.broadcast %106 : f32 to vector<16x128xf32>
    %549 = arith.mulf %285, %548 : vector<16x128xf32>
    %550 = vector.broadcast %116 : f32 to vector<16x128xf32>
    %551 = arith.mulf %297, %550 : vector<16x128xf32>
    %552 = arith.addf %533, %535 : vector<16x128xf32>
    %553 = arith.addf %537, %539 : vector<16x128xf32>
    %554 = arith.addf %541, %543 : vector<16x128xf32>
    %555 = arith.addf %545, %547 : vector<16x128xf32>
    %556 = arith.addf %549, %551 : vector<16x128xf32>
    %557 = arith.addf %552, %553 : vector<16x128xf32>
    %558 = arith.addf %554, %555 : vector<16x128xf32>
    %559 = arith.addf %557, %558 : vector<16x128xf32>
    %560 = arith.addf %559, %556 : vector<16x128xf32>
    %561 = vector.broadcast %126 : f32 to vector<16x128xf32>
    %562 = arith.addf %560, %561 : vector<16x128xf32>
    %cst_106 = arith.constant 0.000000e+00 : f32
    %563 = vector.broadcast %cst_106 : f32 to vector<16x128xf32>
    %564 = arith.maximumf %562, %563 : vector<16x128xf32>
    %565 = math.absf %562 : vector<16x128xf32>
    %cst_107 = arith.constant 0.000000e+00 : f32
    %566 = vector.broadcast %cst_107 : f32 to vector<16x128xf32>
    %567 = arith.subf %566, %565 : vector<16x128xf32>
    %568 = math.exp %567 : vector<16x128xf32>
    %569 = math.log1p %568 : vector<16x128xf32>
    %570 = arith.addf %564, %569 : vector<16x128xf32>
    %571 = vector.broadcast %27 : f32 to vector<16x128xf32>
    %572 = arith.mulf %189, %571 : vector<16x128xf32>
    %573 = vector.broadcast %37 : f32 to vector<16x128xf32>
    %574 = arith.mulf %201, %573 : vector<16x128xf32>
    %575 = vector.broadcast %47 : f32 to vector<16x128xf32>
    %576 = arith.mulf %213, %575 : vector<16x128xf32>
    %577 = vector.broadcast %57 : f32 to vector<16x128xf32>
    %578 = arith.mulf %225, %577 : vector<16x128xf32>
    %579 = vector.broadcast %67 : f32 to vector<16x128xf32>
    %580 = arith.mulf %237, %579 : vector<16x128xf32>
    %581 = vector.broadcast %77 : f32 to vector<16x128xf32>
    %582 = arith.mulf %249, %581 : vector<16x128xf32>
    %583 = vector.broadcast %87 : f32 to vector<16x128xf32>
    %584 = arith.mulf %261, %583 : vector<16x128xf32>
    %585 = vector.broadcast %97 : f32 to vector<16x128xf32>
    %586 = arith.mulf %273, %585 : vector<16x128xf32>
    %587 = vector.broadcast %107 : f32 to vector<16x128xf32>
    %588 = arith.mulf %285, %587 : vector<16x128xf32>
    %589 = vector.broadcast %117 : f32 to vector<16x128xf32>
    %590 = arith.mulf %297, %589 : vector<16x128xf32>
    %591 = arith.addf %572, %574 : vector<16x128xf32>
    %592 = arith.addf %576, %578 : vector<16x128xf32>
    %593 = arith.addf %580, %582 : vector<16x128xf32>
    %594 = arith.addf %584, %586 : vector<16x128xf32>
    %595 = arith.addf %588, %590 : vector<16x128xf32>
    %596 = arith.addf %591, %592 : vector<16x128xf32>
    %597 = arith.addf %593, %594 : vector<16x128xf32>
    %598 = arith.addf %596, %597 : vector<16x128xf32>
    %599 = arith.addf %598, %595 : vector<16x128xf32>
    %600 = vector.broadcast %127 : f32 to vector<16x128xf32>
    %601 = arith.addf %599, %600 : vector<16x128xf32>
    %cst_108 = arith.constant 0.000000e+00 : f32
    %602 = vector.broadcast %cst_108 : f32 to vector<16x128xf32>
    %603 = arith.maximumf %601, %602 : vector<16x128xf32>
    %604 = math.absf %601 : vector<16x128xf32>
    %cst_109 = arith.constant 0.000000e+00 : f32
    %605 = vector.broadcast %cst_109 : f32 to vector<16x128xf32>
    %606 = arith.subf %605, %604 : vector<16x128xf32>
    %607 = math.exp %606 : vector<16x128xf32>
    %608 = math.log1p %607 : vector<16x128xf32>
    %609 = arith.addf %603, %608 : vector<16x128xf32>
    %610 = vector.broadcast %28 : f32 to vector<16x128xf32>
    %611 = arith.mulf %189, %610 : vector<16x128xf32>
    %612 = vector.broadcast %38 : f32 to vector<16x128xf32>
    %613 = arith.mulf %201, %612 : vector<16x128xf32>
    %614 = vector.broadcast %48 : f32 to vector<16x128xf32>
    %615 = arith.mulf %213, %614 : vector<16x128xf32>
    %616 = vector.broadcast %58 : f32 to vector<16x128xf32>
    %617 = arith.mulf %225, %616 : vector<16x128xf32>
    %618 = vector.broadcast %68 : f32 to vector<16x128xf32>
    %619 = arith.mulf %237, %618 : vector<16x128xf32>
    %620 = vector.broadcast %78 : f32 to vector<16x128xf32>
    %621 = arith.mulf %249, %620 : vector<16x128xf32>
    %622 = vector.broadcast %88 : f32 to vector<16x128xf32>
    %623 = arith.mulf %261, %622 : vector<16x128xf32>
    %624 = vector.broadcast %98 : f32 to vector<16x128xf32>
    %625 = arith.mulf %273, %624 : vector<16x128xf32>
    %626 = vector.broadcast %108 : f32 to vector<16x128xf32>
    %627 = arith.mulf %285, %626 : vector<16x128xf32>
    %628 = vector.broadcast %118 : f32 to vector<16x128xf32>
    %629 = arith.mulf %297, %628 : vector<16x128xf32>
    %630 = arith.addf %611, %613 : vector<16x128xf32>
    %631 = arith.addf %615, %617 : vector<16x128xf32>
    %632 = arith.addf %619, %621 : vector<16x128xf32>
    %633 = arith.addf %623, %625 : vector<16x128xf32>
    %634 = arith.addf %627, %629 : vector<16x128xf32>
    %635 = arith.addf %630, %631 : vector<16x128xf32>
    %636 = arith.addf %632, %633 : vector<16x128xf32>
    %637 = arith.addf %635, %636 : vector<16x128xf32>
    %638 = arith.addf %637, %634 : vector<16x128xf32>
    %639 = vector.broadcast %128 : f32 to vector<16x128xf32>
    %640 = arith.addf %638, %639 : vector<16x128xf32>
    %cst_110 = arith.constant 0.000000e+00 : f32
    %641 = vector.broadcast %cst_110 : f32 to vector<16x128xf32>
    %642 = arith.maximumf %640, %641 : vector<16x128xf32>
    %643 = math.absf %640 : vector<16x128xf32>
    %cst_111 = arith.constant 0.000000e+00 : f32
    %644 = vector.broadcast %cst_111 : f32 to vector<16x128xf32>
    %645 = arith.subf %644, %643 : vector<16x128xf32>
    %646 = math.exp %645 : vector<16x128xf32>
    %647 = math.log1p %646 : vector<16x128xf32>
    %648 = arith.addf %642, %647 : vector<16x128xf32>
    %649 = vector.broadcast %29 : f32 to vector<16x128xf32>
    %650 = arith.mulf %189, %649 : vector<16x128xf32>
    %651 = vector.broadcast %39 : f32 to vector<16x128xf32>
    %652 = arith.mulf %201, %651 : vector<16x128xf32>
    %653 = vector.broadcast %49 : f32 to vector<16x128xf32>
    %654 = arith.mulf %213, %653 : vector<16x128xf32>
    %655 = vector.broadcast %59 : f32 to vector<16x128xf32>
    %656 = arith.mulf %225, %655 : vector<16x128xf32>
    %657 = vector.broadcast %69 : f32 to vector<16x128xf32>
    %658 = arith.mulf %237, %657 : vector<16x128xf32>
    %659 = vector.broadcast %79 : f32 to vector<16x128xf32>
    %660 = arith.mulf %249, %659 : vector<16x128xf32>
    %661 = vector.broadcast %89 : f32 to vector<16x128xf32>
    %662 = arith.mulf %261, %661 : vector<16x128xf32>
    %663 = vector.broadcast %99 : f32 to vector<16x128xf32>
    %664 = arith.mulf %273, %663 : vector<16x128xf32>
    %665 = vector.broadcast %109 : f32 to vector<16x128xf32>
    %666 = arith.mulf %285, %665 : vector<16x128xf32>
    %667 = vector.broadcast %119 : f32 to vector<16x128xf32>
    %668 = arith.mulf %297, %667 : vector<16x128xf32>
    %669 = arith.addf %650, %652 : vector<16x128xf32>
    %670 = arith.addf %654, %656 : vector<16x128xf32>
    %671 = arith.addf %658, %660 : vector<16x128xf32>
    %672 = arith.addf %662, %664 : vector<16x128xf32>
    %673 = arith.addf %666, %668 : vector<16x128xf32>
    %674 = arith.addf %669, %670 : vector<16x128xf32>
    %675 = arith.addf %671, %672 : vector<16x128xf32>
    %676 = arith.addf %674, %675 : vector<16x128xf32>
    %677 = arith.addf %676, %673 : vector<16x128xf32>
    %678 = vector.broadcast %129 : f32 to vector<16x128xf32>
    %679 = arith.addf %677, %678 : vector<16x128xf32>
    %cst_112 = arith.constant 0.000000e+00 : f32
    %680 = vector.broadcast %cst_112 : f32 to vector<16x128xf32>
    %681 = arith.maximumf %679, %680 : vector<16x128xf32>
    %682 = math.absf %679 : vector<16x128xf32>
    %cst_113 = arith.constant 0.000000e+00 : f32
    %683 = vector.broadcast %cst_113 : f32 to vector<16x128xf32>
    %684 = arith.subf %683, %682 : vector<16x128xf32>
    %685 = math.exp %684 : vector<16x128xf32>
    %686 = math.log1p %685 : vector<16x128xf32>
    %687 = arith.addf %681, %686 : vector<16x128xf32>
    %688 = vector.broadcast %130 : f32 to vector<16x128xf32>
    %689 = arith.mulf %336, %688 : vector<16x128xf32>
    %690 = vector.broadcast %131 : f32 to vector<16x128xf32>
    %691 = arith.mulf %375, %690 : vector<16x128xf32>
    %692 = vector.broadcast %132 : f32 to vector<16x128xf32>
    %693 = arith.mulf %414, %692 : vector<16x128xf32>
    %694 = vector.broadcast %133 : f32 to vector<16x128xf32>
    %695 = arith.mulf %453, %694 : vector<16x128xf32>
    %696 = vector.broadcast %134 : f32 to vector<16x128xf32>
    %697 = arith.mulf %492, %696 : vector<16x128xf32>
    %698 = vector.broadcast %135 : f32 to vector<16x128xf32>
    %699 = arith.mulf %531, %698 : vector<16x128xf32>
    %700 = vector.broadcast %136 : f32 to vector<16x128xf32>
    %701 = arith.mulf %570, %700 : vector<16x128xf32>
    %702 = vector.broadcast %137 : f32 to vector<16x128xf32>
    %703 = arith.mulf %609, %702 : vector<16x128xf32>
    %704 = vector.broadcast %138 : f32 to vector<16x128xf32>
    %705 = arith.mulf %648, %704 : vector<16x128xf32>
    %706 = vector.broadcast %139 : f32 to vector<16x128xf32>
    %707 = arith.mulf %687, %706 : vector<16x128xf32>
    %708 = arith.addf %689, %691 : vector<16x128xf32>
    %709 = arith.addf %693, %695 : vector<16x128xf32>
    %710 = arith.addf %697, %699 : vector<16x128xf32>
    %711 = arith.addf %701, %703 : vector<16x128xf32>
    %712 = arith.addf %705, %707 : vector<16x128xf32>
    %713 = arith.addf %708, %709 : vector<16x128xf32>
    %714 = arith.addf %710, %711 : vector<16x128xf32>
    %715 = arith.addf %713, %714 : vector<16x128xf32>
    %716 = arith.addf %715, %712 : vector<16x128xf32>
    %717 = vector.broadcast %140 : f32 to vector<16x128xf32>
    %718 = arith.addf %716, %717 : vector<16x128xf32>
    %c0_114 = arith.constant 0 : index
    %719 = arith.index_cast %175 : i32 to index
    %c0_115 = arith.constant 0 : index
    %720 = vector.load %arg14[%c0_114, %719, %c0_115] : memref<4x16x128xf32, #tpu.memory_space<vmem>>, vector<1x16x128xf32>
    %721 = vector.shape_cast %720 : vector<1x16x128xf32> to vector<16x128xf32>
    %722 = vector.shape_cast %718 : vector<16x128xf32> to vector<1x16x128xf32>
    tpu.vector_store %arg14[%c0_114, %719, %c0_115], %722 {strides = array<i32>} : memref<4x16x128xf32, #tpu.memory_space<vmem>>, vector<1x16x128xf32>,
    %723 = vector.broadcast %141 : f32 to vector<16x128xf32>
    %724 = arith.mulf %336, %723 : vector<16x128xf32>
    %725 = vector.broadcast %142 : f32 to vector<16x128xf32>
    %726 = arith.mulf %375, %725 : vector<16x128xf32>
    %727 = vector.broadcast %143 : f32 to vector<16x128xf32>
    %728 = arith.mulf %414, %727 : vector<16x128xf32>
    %729 = vector.broadcast %144 : f32 to vector<16x128xf32>
    %730 = arith.mulf %453, %729 : vector<16x128xf32>
    %731 = vector.broadcast %145 : f32 to vector<16x128xf32>
    %732 = arith.mulf %492, %731 : vector<16x128xf32>
    %733 = vector.broadcast %146 : f32 to vector<16x128xf32>
    %734 = arith.mulf %531, %733 : vector<16x128xf32>
    %735 = vector.broadcast %147 : f32 to vector<16x128xf32>
    %736 = arith.mulf %570, %735 : vector<16x128xf32>
    %737 = vector.broadcast %148 : f32 to vector<16x128xf32>
    %738 = arith.mulf %609, %737 : vector<16x128xf32>
    %739 = vector.broadcast %149 : f32 to vector<16x128xf32>
    %740 = arith.mulf %648, %739 : vector<16x128xf32>
    %741 = vector.broadcast %150 : f32 to vector<16x128xf32>
    %742 = arith.mulf %687, %741 : vector<16x128xf32>
    %743 = arith.addf %724, %726 : vector<16x128xf32>
    %744 = arith.addf %728, %730 : vector<16x128xf32>
    %745 = arith.addf %732, %734 : vector<16x128xf32>
    %746 = arith.addf %736, %738 : vector<16x128xf32>
    %747 = arith.addf %740, %742 : vector<16x128xf32>
    %748 = arith.addf %743, %744 : vector<16x128xf32>
    %749 = arith.addf %745, %746 : vector<16x128xf32>
    %750 = arith.addf %748, %749 : vector<16x128xf32>
    %751 = arith.addf %750, %747 : vector<16x128xf32>
    %752 = vector.broadcast %151 : f32 to vector<16x128xf32>
    %753 = arith.addf %751, %752 : vector<16x128xf32>
    %cst_116 = arith.constant 0.000000e+00 : f32
    %754 = vector.broadcast %cst_116 : f32 to vector<16x128xf32>
    %755 = arith.maximumf %753, %754 : vector<16x128xf32>
    %756 = math.absf %753 : vector<16x128xf32>
    %cst_117 = arith.constant 0.000000e+00 : f32
    %757 = vector.broadcast %cst_117 : f32 to vector<16x128xf32>
    %758 = arith.subf %757, %756 : vector<16x128xf32>
    %759 = math.exp %758 : vector<16x128xf32>
    %760 = math.log1p %759 : vector<16x128xf32>
    %761 = arith.addf %755, %760 : vector<16x128xf32>
    %c1_118 = arith.constant 1 : index
    %762 = arith.index_cast %175 : i32 to index
    %c0_119 = arith.constant 0 : index
    %763 = vector.load %arg14[%c1_118, %762, %c0_119] : memref<4x16x128xf32, #tpu.memory_space<vmem>>, vector<1x16x128xf32>
    %764 = vector.shape_cast %763 : vector<1x16x128xf32> to vector<16x128xf32>
    %765 = vector.shape_cast %761 : vector<16x128xf32> to vector<1x16x128xf32>
    tpu.vector_store %arg14[%c1_118, %762, %c0_119], %765 {strides = array<i32>} : memref<4x16x128xf32, #tpu.memory_space<vmem>>, vector<1x16x128xf32>,
    %766 = vector.broadcast %152 : f32 to vector<16x128xf32>
    %767 = arith.mulf %336, %766 : vector<16x128xf32>
    %768 = vector.broadcast %153 : f32 to vector<16x128xf32>
    %769 = arith.mulf %375, %768 : vector<16x128xf32>
    %770 = vector.broadcast %154 : f32 to vector<16x128xf32>
    %771 = arith.mulf %414, %770 : vector<16x128xf32>
    %772 = vector.broadcast %155 : f32 to vector<16x128xf32>
    %773 = arith.mulf %453, %772 : vector<16x128xf32>
    %774 = vector.broadcast %156 : f32 to vector<16x128xf32>
    %775 = arith.mulf %492, %774 : vector<16x128xf32>
    %776 = vector.broadcast %157 : f32 to vector<16x128xf32>
    %777 = arith.mulf %531, %776 : vector<16x128xf32>
    %778 = vector.broadcast %158 : f32 to vector<16x128xf32>
    %779 = arith.mulf %570, %778 : vector<16x128xf32>
    %780 = vector.broadcast %159 : f32 to vector<16x128xf32>
    %781 = arith.mulf %609, %780 : vector<16x128xf32>
    %782 = vector.broadcast %160 : f32 to vector<16x128xf32>
    %783 = arith.mulf %648, %782 : vector<16x128xf32>
    %784 = vector.broadcast %161 : f32 to vector<16x128xf32>
    %785 = arith.mulf %687, %784 : vector<16x128xf32>
    %786 = arith.addf %767, %769 : vector<16x128xf32>
    %787 = arith.addf %771, %773 : vector<16x128xf32>
    %788 = arith.addf %775, %777 : vector<16x128xf32>
    %789 = arith.addf %779, %781 : vector<16x128xf32>
    %790 = arith.addf %783, %785 : vector<16x128xf32>
    %791 = arith.addf %786, %787 : vector<16x128xf32>
    %792 = arith.addf %788, %789 : vector<16x128xf32>
    %793 = arith.addf %791, %792 : vector<16x128xf32>
    %794 = arith.addf %793, %790 : vector<16x128xf32>
    %795 = vector.broadcast %162 : f32 to vector<16x128xf32>
    %796 = arith.addf %794, %795 : vector<16x128xf32>
    %cst_120 = arith.constant 0.000000e+00 : f32
    %797 = vector.broadcast %cst_120 : f32 to vector<16x128xf32>
    %798 = arith.maximumf %796, %797 : vector<16x128xf32>
    %799 = math.absf %796 : vector<16x128xf32>
    %cst_121 = arith.constant 0.000000e+00 : f32
    %800 = vector.broadcast %cst_121 : f32 to vector<16x128xf32>
    %801 = arith.subf %800, %799 : vector<16x128xf32>
    %802 = math.exp %801 : vector<16x128xf32>
    %803 = math.log1p %802 : vector<16x128xf32>
    %804 = arith.addf %798, %803 : vector<16x128xf32>
    %cst_122 = arith.constant 1.000000e+00 : f32
    %805 = vector.broadcast %cst_122 : f32 to vector<16x128xf32>
    %806 = arith.addf %804, %805 : vector<16x128xf32>
    %c2_123 = arith.constant 2 : index
    %807 = arith.index_cast %175 : i32 to index
    %c0_124 = arith.constant 0 : index
    %808 = vector.load %arg14[%c2_123, %807, %c0_124] : memref<4x16x128xf32, #tpu.memory_space<vmem>>, vector<1x16x128xf32>
    %809 = vector.shape_cast %808 : vector<1x16x128xf32> to vector<16x128xf32>
    %810 = vector.shape_cast %806 : vector<16x128xf32> to vector<1x16x128xf32>
    tpu.vector_store %arg14[%c2_123, %807, %c0_124], %810 {strides = array<i32>} : memref<4x16x128xf32, #tpu.memory_space<vmem>>, vector<1x16x128xf32>,
    %811 = vector.broadcast %163 : f32 to vector<16x128xf32>
    %812 = arith.mulf %336, %811 : vector<16x128xf32>
    %813 = vector.broadcast %164 : f32 to vector<16x128xf32>
    %814 = arith.mulf %375, %813 : vector<16x128xf32>
    %815 = vector.broadcast %165 : f32 to vector<16x128xf32>
    %816 = arith.mulf %414, %815 : vector<16x128xf32>
    %817 = vector.broadcast %166 : f32 to vector<16x128xf32>
    %818 = arith.mulf %453, %817 : vector<16x128xf32>
    %819 = vector.broadcast %167 : f32 to vector<16x128xf32>
    %820 = arith.mulf %492, %819 : vector<16x128xf32>
    %821 = vector.broadcast %168 : f32 to vector<16x128xf32>
    %822 = arith.mulf %531, %821 : vector<16x128xf32>
    %823 = vector.broadcast %169 : f32 to vector<16x128xf32>
    %824 = arith.mulf %570, %823 : vector<16x128xf32>
    %825 = vector.broadcast %170 : f32 to vector<16x128xf32>
    %826 = arith.mulf %609, %825 : vector<16x128xf32>
    %827 = vector.broadcast %171 : f32 to vector<16x128xf32>
    %828 = arith.mulf %648, %827 : vector<16x128xf32>
    %829 = vector.broadcast %172 : f32 to vector<16x128xf32>
    %830 = arith.mulf %687, %829 : vector<16x128xf32>
    %831 = arith.addf %812, %814 : vector<16x128xf32>
    %832 = arith.addf %816, %818 : vector<16x128xf32>
    %833 = arith.addf %820, %822 : vector<16x128xf32>
    %834 = arith.addf %824, %826 : vector<16x128xf32>
    %835 = arith.addf %828, %830 : vector<16x128xf32>
    %836 = arith.addf %831, %832 : vector<16x128xf32>
    %837 = arith.addf %833, %834 : vector<16x128xf32>
    %838 = arith.addf %836, %837 : vector<16x128xf32>
    %839 = arith.addf %838, %835 : vector<16x128xf32>
    %840 = vector.broadcast %173 : f32 to vector<16x128xf32>
    %841 = arith.addf %839, %840 : vector<16x128xf32>
    %cst_125 = arith.constant 0.000000e+00 : f32
    %842 = vector.broadcast %cst_125 : f32 to vector<16x128xf32>
    %843 = arith.maximumf %841, %842 : vector<16x128xf32>
    %844 = math.absf %841 : vector<16x128xf32>
    %cst_126 = arith.constant 0.000000e+00 : f32
    %845 = vector.broadcast %cst_126 : f32 to vector<16x128xf32>
    %846 = arith.subf %845, %844 : vector<16x128xf32>
    %847 = math.exp %846 : vector<16x128xf32>
    %848 = math.log1p %847 : vector<16x128xf32>
    %849 = arith.addf %843, %848 : vector<16x128xf32>
    %c3_127 = arith.constant 3 : index
    %850 = arith.index_cast %175 : i32 to index
    %c0_128 = arith.constant 0 : index
    %851 = vector.load %arg14[%c3_127, %850, %c0_128] : memref<4x16x128xf32, #tpu.memory_space<vmem>>, vector<1x16x128xf32>
    %852 = vector.shape_cast %851 : vector<1x16x128xf32> to vector<16x128xf32>
    %853 = vector.shape_cast %849 : vector<16x128xf32> to vector<1x16x128xf32>
    tpu.vector_store %arg14[%c3_127, %850, %c0_128], %853 {strides = array<i32>} : memref<4x16x128xf32, #tpu.memory_space<vmem>>, vector<1x16x128xf32>,
    %c1_i32 = arith.constant 1 : i32
    return
  }
  func.func @transform_0(%arg0: i32) -> (i32, i32) {
    %c0_i32 = arith.constant 0 : i32
    %c0_i32_0 = arith.constant 0 : i32
    return %arg0, %c0_i32 : i32, i32
  }
  func.func @transform_1(%arg0: i32) -> i32 {
    %c0_i32 = arith.constant 0 : i32
    %c0_i32_0 = arith.constant 0 : i32
    return %c0_i32 : i32
  }
  func.func @transform_2(%arg0: i32) -> i32 {
    %c0_i32 = arith.constant 0 : i32
    %c0_i32_0 = arith.constant 0 : i32
    return %c0_i32 : i32
  }
  func.func @transform_3(%arg0: i32) -> i32 {
    %c0_i32 = arith.constant 0 : i32
    %c0_i32_0 = arith.constant 0 : i32
    return %c0_i32 : i32
  }
  func.func @transform_4(%arg0: i32) -> i32 {
    %c0_i32 = arith.constant 0 : i32
    %c0_i32_0 = arith.constant 0 : i32
    return %c0_i32 : i32
  }
  func.func @transform_5(%arg0: i32) -> i32 {
    %c0_i32 = arith.constant 0 : i32
    %c0_i32_0 = arith.constant 0 : i32
    return %c0_i32 : i32
  }
  func.func @transform_6(%arg0: i32) -> i32 {
    %c0_i32 = arith.constant 0 : i32
    %c0_i32_0 = arith.constant 0 : i32
    return %c0_i32 : i32
  }
  func.func @transform_7(%arg0: i32) -> i32 {
    %c0_i32 = arith.constant 0 : i32
    %c0_i32_0 = arith.constant 0 : i32
    return %c0_i32 : i32
  }
  func.func @transform_8(%arg0: i32) -> i32 {
    %c0_i32 = arith.constant 0 : i32
    %c0_i32_0 = arith.constant 0 : i32
    return %c0_i32 : i32
  }
  func.func @transform_9(%arg0: i32) -> i32 {
    %c0_i32 = arith.constant 0 : i32
    %c0_i32_0 = arith.constant 0 : i32
    return %c0_i32 : i32
  }
  func.func @transform_10(%arg0: i32) -> i32 {
    %c0_i32 = arith.constant 0 : i32
    %c0_i32_0 = arith.constant 0 : i32
    return %c0_i32 : i32
  }
  func.func @transform_11(%arg0: i32) -> i32 {
    %c0_i32 = arith.constant 0 : i32
    %c0_i32_0 = arith.constant 0 : i32
    return %c0_i32 : i32
  }
  func.func @transform_12(%arg0: i32) -> i32 {
    %c0_i32 = arith.constant 0 : i32
    %c0_i32_0 = arith.constant 0 : i32
    return %c0_i32 : i32
  }
  func.func @transform_13(%arg0: i32) -> (i32, i32, i32) {
    %c0_i32 = arith.constant 0 : i32
    %c0_i32_0 = arith.constant 0 : i32
    %c0_i32_1 = arith.constant 0 : i32
    return %c0_i32, %arg0, %c0_i32_0 : i32, i32, i32
  }
}

</mosaic_0001>

<llo_original>
// kernel: tpu_custom_call.1
$region0: #{tpu_custom_call.1}
  #allocation0 [shape = 'u32[]', space=smem, size = 0x4, offset = 0x4, fixed_abs, tag = 'smem constant byte address 0x4 - core index']
  #allocation1 [shape = 'u32[144,128]{1,0:T(1,128)}', space=vmem, size = 0x12000, scoped, tag = 'internal scratch']
  #allocation2 [shape = 'f32[1]{0:T(128)S(6)}', space=smem, size = 0x200, scoped, tag = 'scoped memory for tpu_custom_call.1']
  #allocation3 [shape = 'f32[1]{0:T(128)S(6)}', space=smem, size = 0x200, scoped, tag = 'scoped memory for tpu_custom_call.1']
  #allocation4 [shape = 'f32[1]{0:T(128)S(6)}', space=smem, size = 0x200, scoped, tag = 'scoped memory for tpu_custom_call.1']
  #allocation5 [shape = 'f32[1]{0:T(128)S(6)}', space=smem, size = 0x200, scoped, tag = 'scoped memory for tpu_custom_call.1']
  %s0 = inlined_call_operand.hbm [shape: f32[16,128], index: 0, kind: input, shape index: {}]
  %s1 = inlined_call_operand.vmem [shape: f32[10], index: 1, kind: input, shape index: {}]
  %s2 = inlined_call_operand.vmem [shape: f32[10], index: 2, kind: input, shape index: {}]
  %s3 = inlined_call_operand.vmem [shape: f32[100], index: 3, kind: input, shape index: {}]
  %s4 = inlined_call_operand.vmem [shape: f32[10], index: 4, kind: input, shape index: {}]
  %s5 = inlined_call_operand.vmem [shape: f32[10], index: 5, kind: input, shape index: {}]
  %s6 = inlined_call_operand.<no memory space> [shape: f32[1], index: 6, kind: input, shape index: {}]
  %s7 = inlined_call_operand.vmem [shape: f32[10], index: 7, kind: input, shape index: {}]
  %s8 = inlined_call_operand.<no memory space> [shape: f32[1], index: 8, kind: input, shape index: {}]
  %s9 = inlined_call_operand.vmem [shape: f32[10], index: 9, kind: input, shape index: {}]
  %s10 = inlined_call_operand.<no memory space> [shape: f32[1], index: 10, kind: input, shape index: {}]
  %s11 = inlined_call_operand.vmem [shape: f32[10], index: 11, kind: input, shape index: {}]
  %s12 = inlined_call_operand.<no memory space> [shape: f32[1], index: 12, kind: input, shape index: {}]
  %s13 = inlined_call_operand.hbm [shape: f32[4,16,128], index: 13, kind: output, shape index: {}]
  %s14 = sld [smem:[#allocation0]]
  $region98: #{tpu_custom_call.1} parent=0
    _
  %s16 = ssub.s32 1, %s14
  %s17 = scalar_select 0, %s16, %s14
  %18 = sst [smem:[#allocation2]] %s6
  %19 = sst [smem:[#allocation3]] %s8
  %20 = sst [smem:[#allocation4]] %s10
  %21 = sst [smem:[#allocation5]] %s12
  $region1: #{tpu_custom_call.1} parent=0
    #allocation6 [shape = 'u8[8192]{0}', space=vmem, size = 0x2000, scoped, tag = 'input window, operand 0, single buffered']
    #allocation7 [shape = 's32[1]{0}', space=sflag, size = 0x4, scoped, tag = 'scoped memory for tpu_custom_call.1']
    #allocation8 [shape = 's32[1]{0}', space=sflag, size = 0x4, scoped, tag = 'scoped memory for tpu_custom_call.1']
    #allocation9 [shape = 's32[1]{0}', space=sflag, size = 0x4, scoped, tag = 'scoped memory for tpu_custom_call.1']
    #allocation10 [shape = 'u8[512]{0}', space=smem, size = 0x200, scoped, tag = 'input window, operand 1, single buffered']
    #allocation11 [shape = 'u8[512]{0}', space=smem, size = 0x200, scoped, tag = 'input window, operand 2, single buffered']
    #allocation12 [shape = 's32[1]{0}', space=sflag, size = 0x4, scoped, tag = 'scoped memory for tpu_custom_call.1']
    #allocation13 [shape = 'u8[512]{0}', space=smem, size = 0x200, scoped, tag = 'input window, operand 3, single buffered']
    #allocation14 [shape = 'u8[512]{0}', space=smem, size = 0x200, scoped, tag = 'input window, operand 4, single buffered']
    #allocation15 [shape = 's32[1]{0}', space=sflag, size = 0x4, scoped, tag = 'scoped memory for tpu_custom_call.1']
    #allocation16 [shape = 'u8[512]{0}', space=smem, size = 0x200, scoped, tag = 'input window, operand 5, single buffered']
    #allocation17 [shape = 'u8[512]{0}', space=smem, size = 0x200, scoped, tag = 'input window, operand 7, single buffered']
    #allocation18 [shape = 's32[1]{0}', space=sflag, size = 0x4, scoped, tag = 'scoped memory for tpu_custom_call.1']
    #allocation19 [shape = 'u8[512]{0}', space=smem, size = 0x200, scoped, tag = 'input window, operand 9, single buffered']
    #allocation20 [shape = 'u8[512]{0}', space=smem, size = 0x200, scoped, tag = 'input window, operand 11, single buffered']
    #allocation21 [shape = 's32[1]{0}', space=sflag, size = 0x4, scoped, tag = 'scoped memory for tpu_custom_call.1']
    #allocation22 [shape = 'u8[32768]{0}', space=vmem, size = 0x8000, scoped, tag = 'output window, operand 0, single buffered']
    %22 = vsyncpa [#allocation7], 0
    %23 = vsyncpa [#allocation9], 0
    %24 = vsyncpa [#allocation12], 0
    %25 = vsyncpa [#allocation15], 0
    %26 = vsyncpa [#allocation18], 0
    %27 = vsyncpa [#allocation21], 0
    %28 = vsyncpa [#allocation8], 0
    // Predicated region
    $region2: #{tpu_custom_call.1} parent=1 // pred_check
      _
    $region3: #{tpu_custom_call.1} parent=1 // pred_check_branch
      %30 = sbr.rel (0) target = $region5
    $region4: #{tpu_custom_call.1} parent=1 // pred_region
      %s32 = ssub.s32 256, 256
      %33 = vsyncadd [#allocation7], %s32
      %s34 = sshll.u32 [#allocation6], 4
      %s35 = int_to_ptr.vmem [resolvable:$true] %s34
      %40 = dma.hbm_to_vmem [thread:$0]  %s0, 256, %s35, [#allocation7], 128, 128, 8
    $region5: #{tpu_custom_call.1} parent=1 // pred_fallthru
      _
    // Predicated region
    $region6: #{tpu_custom_call.1} parent=1 // pred_check
      _
    $region7: #{tpu_custom_call.1} parent=1 // pred_check_branch
      %42 = sbr.rel (0) target = $region9
    $region8: #{tpu_custom_call.1} parent=1 // pred_region
      %s44 = ssub.s32 16, 16
      %45 = vsyncadd [#allocation9], %s44
      %s47 = sshll.u32 %s1, 4
      %s48 = int_to_ptr.vmem [resolvable:$true] %s47
      %50 = dma.vmem_to_smem %s48, 16, [#allocation10], [#allocation9]
    $region9: #{tpu_custom_call.1} parent=1 // pred_fallthru
      _
    // Predicated region
    $region10: #{tpu_custom_call.1} parent=1 // pred_check
      _
    $region11: #{tpu_custom_call.1} parent=1 // pred_check_branch
      %52 = sbr.rel (0) target = $region13
    $region12: #{tpu_custom_call.1} parent=1 // pred_region
      %s54 = ssub.s32 16, 16
      %55 = vsyncadd [#allocation12], %s54
      %s57 = sshll.u32 %s2, 4
      %s58 = int_to_ptr.vmem [resolvable:$true] %s57
      %60 = dma.vmem_to_smem %s58, 16, [#allocation11], [#allocation12]
    $region13: #{tpu_custom_call.1} parent=1 // pred_fallthru
      _
    // Predicated region
    $region14: #{tpu_custom_call.1} parent=1 // pred_check
      _
    $region15: #{tpu_custom_call.1} parent=1 // pred_check_branch
      %62 = sbr.rel (0) target = $region17
    $region16: #{tpu_custom_call.1} parent=1 // pred_region
      %s64 = ssub.s32 16, 16
      %65 = vsyncadd [#allocation12], %s64
      %s67 = sshll.u32 %s3, 4
      %s68 = int_to_ptr.vmem [resolvable:$true] %s67
      %70 = dma.vmem_to_smem %s68, 16, [#allocation13], [#allocation12]
    $region17: #{tpu_custom_call.1} parent=1 // pred_fallthru
      _
    // Predicated region
    $region18: #{tpu_custom_call.1} parent=1 // pred_check
      _
    $region19: #{tpu_custom_call.1} parent=1 // pred_check_branch
      %72 = sbr.rel (0) target = $region21
    $region20: #{tpu_custom_call.1} parent=1 // pred_region
      %s74 = ssub.s32 16, 16
      %75 = vsyncadd [#allocation15], %s74
      %s77 = sshll.u32 %s4, 4
      %s78 = int_to_ptr.vmem [resolvable:$true] %s77
      %80 = dma.vmem_to_smem %s78, 16, [#allocation14], [#allocation15]
    $region21: #{tpu_custom_call.1} parent=1 // pred_fallthru
      _
    // Predicated region
    $region22: #{tpu_custom_call.1} parent=1 // pred_check
      _
    $region23: #{tpu_custom_call.1} parent=1 // pred_check_branch
      %82 = sbr.rel (0) target = $region25
    $region24: #{tpu_custom_call.1} parent=1 // pred_region
      %s84 = ssub.s32 16, 16
      %85 = vsyncadd [#allocation15], %s84
      %s87 = sshll.u32 %s5, 4
      %s88 = int_to_ptr.vmem [resolvable:$true] %s87
      %90 = dma.vmem_to_smem %s88, 16, [#allocation16], [#allocation15]
    $region25: #{tpu_custom_call.1} parent=1 // pred_fallthru
      _
    // Predicated region
    $region26: #{tpu_custom_call.1} parent=1 // pred_check
      _
    $region27: #{tpu_custom_call.1} parent=1 // pred_check_branch
      %92 = sbr.rel (0) target = $region29
    $region28: #{tpu_custom_call.1} parent=1 // pred_region
      _
    $region29: #{tpu_custom_call.1} parent=1 // pred_fallthru
      _
    // Predicated region
    $region30: #{tpu_custom_call.1} parent=1 // pred_check
      _
    $region31: #{tpu_custom_call.1} parent=1 // pred_check_branch
      %94 = sbr.rel (0) target = $region33
    $region32: #{tpu_custom_call.1} parent=1 // pred_region
      %s96 = ssub.s32 16, 16
      %97 = vsyncadd [#allocation18], %s96
      %s99 = sshll.u32 %s7, 4
      %s100 = int_to_ptr.vmem [resolvable:$true] %s99
      %102 = dma.vmem_to_smem %s100, 16, [#allocation17], [#allocation18]
    $region33: #{tpu_custom_call.1} parent=1 // pred_fallthru
      _
    // Predicated region
    $region34: #{tpu_custom_call.1} parent=1 // pred_check
      _
    $region35: #{tpu_custom_call.1} parent=1 // pred_check_branch
      %104 = sbr.rel (0) target = $region37
    $region36: #{tpu_custom_call.1} parent=1 // pred_region
      _
    $region37: #{tpu_custom_call.1} parent=1 // pred_fallthru
      _
    // Predicated region
    $region38: #{tpu_custom_call.1} parent=1 // pred_check
      _
    $region39: #{tpu_custom_call.1} parent=1 // pred_check_branch
      %106 = sbr.rel (0) target = $region41
    $region40: #{tpu_custom_call.1} parent=1 // pred_region
      %s108 = ssub.s32 16, 16
      %109 = vsyncadd [#allocation18], %s108
      %s111 = sshll.u32 %s9, 4
      %s112 = int_to_ptr.vmem [resolvable:$true] %s111
      %114 = dma.vmem_to_smem %s112, 16, [#allocation19], [#allocation18]
    $region41: #{tpu_custom_call.1} parent=1 // pred_fallthru
      _
    // Predicated region
    $region42: #{tpu_custom_call.1} parent=1 // pred_check
      _
    $region43: #{tpu_custom_call.1} parent=1 // pred_check_branch
      %116 = sbr.rel (0) target = $region45
    $region44: #{tpu_custom_call.1} parent=1 // pred_region
      _
    $region45: #{tpu_custom_call.1} parent=1 // pred_fallthru
      _
    // Predicated region
    $region46: #{tpu_custom_call.1} parent=1 // pred_check
      _
    $region47: #{tpu_custom_call.1} parent=1 // pred_check_branch
      %118 = sbr.rel (0) target = $region49
    $region48: #{tpu_custom_call.1} parent=1 // pred_region
      %s120 = ssub.s32 16, 16
      %121 = vsyncadd [#allocation21], %s120
      %s123 = sshll.u32 %s11, 4
      %s124 = int_to_ptr.vmem [resolvable:$true] %s123
      %126 = dma.vmem_to_smem %s124, 16, [#allocation20], [#allocation21]
    $region49: #{tpu_custom_call.1} parent=1 // pred_fallthru
      _
    // Predicated region
    $region50: #{tpu_custom_call.1} parent=1 // pred_check
      _
    $region51: #{tpu_custom_call.1} parent=1 // pred_check_branch
      %128 = sbr.rel (0) target = $region53
    $region52: #{tpu_custom_call.1} parent=1 // pred_region
      _
    $region53: #{tpu_custom_call.1} parent=1 // pred_fallthru
      _
    // Predicated region
    $region54: #{tpu_custom_call.1} parent=1 // pred_check
      _
    $region55: #{tpu_custom_call.1} parent=1 // pred_check_branch
      %130 = sbr.rel (0) target = $region57
    $region56: #{tpu_custom_call.1} parent=1 // pred_region
      %131 = dma.done [#allocation7], 256
    $region57: #{tpu_custom_call.1} parent=1 // pred_fallthru
      _
    // Predicated region
    $region58: #{tpu_custom_call.1} parent=1 // pred_check
      _
    $region59: #{tpu_custom_call.1} parent=1 // pred_check_branch
      %133 = sbr.rel (0) target = $region61
    $region60: #{tpu_custom_call.1} parent=1 // pred_region
      %134 = dma.done [#allocation9], 16
    $region61: #{tpu_custom_call.1} parent=1 // pred_fallthru
      _
    // Predicated region
    $region62: #{tpu_custom_call.1} parent=1 // pred_check
      _
    $region63: #{tpu_custom_call.1} parent=1 // pred_check_branch
      %136 = sbr.rel (0) target = $region65
    $region64: #{tpu_custom_call.1} parent=1 // pred_region
      %137 = dma.done [#allocation12], 16
    $region65: #{tpu_custom_call.1} parent=1 // pred_fallthru
      _
    // Predicated region
    $region66: #{tpu_custom_call.1} parent=1 // pred_check
      _
    $region67: #{tpu_custom_call.1} parent=1 // pred_check_branch
      %139 = sbr.rel (0) target = $region69
    $region68: #{tpu_custom_call.1} parent=1 // pred_region
      %140 = dma.done [#allocation12], 16
    $region69: #{tpu_custom_call.1} parent=1 // pred_fallthru
      _
    // Predicated region
    $region70: #{tpu_custom_call.1} parent=1 // pred_check
      _
    $region71: #{tpu_custom_call.1} parent=1 // pred_check_branch
      %142 = sbr.rel (0) target = $region73
    $region72: #{tpu_custom_call.1} parent=1 // pred_region
      %143 = dma.done [#allocation15], 16
    $region73: #{tpu_custom_call.1} parent=1 // pred_fallthru
      _
    // Predicated region
    $region74: #{tpu_custom_call.1} parent=1 // pred_check
      _
    $region75: #{tpu_custom_call.1} parent=1 // pred_check_branch
      %145 = sbr.rel (0) target = $region77
    $region76: #{tpu_custom_call.1} parent=1 // pred_region
      %146 = dma.done [#allocation15], 16
    $region77: #{tpu_custom_call.1} parent=1 // pred_fallthru
      _
    // Predicated region
    $region78: #{tpu_custom_call.1} parent=1 // pred_check
      _
    $region79: #{tpu_custom_call.1} parent=1 // pred_check_branch
      %148 = sbr.rel (0) target = $region81
    $region80: #{tpu_custom_call.1} parent=1 // pred_region
      %149 = dma.done [#allocation18], 16
    $region81: #{tpu_custom_call.1} parent=1 // pred_fallthru
      _
    // Predicated region
    $region82: #{tpu_custom_call.1} parent=1 // pred_check
      _
    $region83: #{tpu_custom_call.1} parent=1 // pred_check_branch
      %151 = sbr.rel (0) target = $region85
    $region84: #{tpu_custom_call.1} parent=1 // pred_region
      %152 = dma.done [#allocation18], 16
    $region85: #{tpu_custom_call.1} parent=1 // pred_fallthru
      _
    // Predicated region
    $region86: #{tpu_custom_call.1} parent=1 // pred_check
      _
    $region87: #{tpu_custom_call.1} parent=1 // pred_check_branch
      %154 = sbr.rel (0) target = $region89
    $region88: #{tpu_custom_call.1} parent=1 // pred_region
      %155 = dma.done [#allocation21], 16
    $region89: #{tpu_custom_call.1} parent=1 // pred_fallthru
      _
    %156 = sfence
    %s157 = sld [smem:[#allocation10]]
    %s158 = sld [smem:[#allocation10 + $0x1]]
    %s159 = sld [smem:[#allocation10 + $0x2]]
    %s160 = sld [smem:[#allocation10 + $0x3]]
    %s161 = sld [smem:[#allocation10 + $0x4]]
    %s162 = sld [smem:[#allocation10 + $0x5]]
    %s163 = sld [smem:[#allocation10 + $0x6]]
    %s164 = sld [smem:[#allocation10 + $0x7]]
    %s165 = sld [smem:[#allocation10 + $0x8]]
    %s166 = sld [smem:[#allocation10 + $0x9]]
    %s167 = sld [smem:[#allocation11]]
    %s168 = sld [smem:[#allocation11 + $0x1]]
    %s169 = sld [smem:[#allocation11 + $0x2]]
    %s170 = sld [smem:[#allocation11 + $0x3]]
    %s171 = sld [smem:[#allocation11 + $0x4]]
    %s172 = sld [smem:[#allocation11 + $0x5]]
    %s173 = sld [smem:[#allocation11 + $0x6]]
    %s174 = sld [smem:[#allocation11 + $0x7]]
    %s175 = sld [smem:[#allocation11 + $0x8]]
    %s176 = sld [smem:[#allocation11 + $0x9]]
    %s177 = sld [smem:[#allocation13]]
    %s178 = sld [smem:[#allocation13 + $0x1]]
    %s179 = sld [smem:[#allocation13 + $0x2]]
    %s180 = sld [smem:[#allocation13 + $0x3]]
    %s181 = sld [smem:[#allocation13 + $0x4]]
    %s182 = sld [smem:[#allocation13 + $0x5]]
    %s183 = sld [smem:[#allocation13 + $0x6]]
    %s184 = sld [smem:[#allocation13 + $0x7]]
    %s185 = sld [smem:[#allocation13 + $0x8]]
    %s186 = sld [smem:[#allocation13 + $0x9]]
    %s187 = sld [smem:[#allocation13 + $0xa]]
    %s188 = sld [smem:[#allocation13 + $0xb]]
    %s189 = sld [smem:[#allocation13 + $0xc]]
    %s190 = sld [smem:[#allocation13 + $0xd]]
    %s191 = sld [smem:[#allocation13 + $0xe]]
    %s192 = sld [smem:[#allocation13 + $0xf]]
    %s193 = sld [smem:[#allocation13 + $0x10]]
    %s194 = sld [smem:[#allocation13 + $0x11]]
    %s195 = sld [smem:[#allocation13 + $0x12]]
    %s196 = sld [smem:[#allocation13 + $0x13]]
    %s197 = sld [smem:[#allocation13 + $0x14]]
    %s198 = sld [smem:[#allocation13 + $0x15]]
    %s199 = sld [smem:[#allocation13 + $0x16]]
    %s200 = sld [smem:[#allocation13 + $0x17]]
    %s201 = sld [smem:[#allocation13 + $0x18]]
    %s202 = sld [smem:[#allocation13 + $0x19]]
    %s203 = sld [smem:[#allocation13 + $0x1a]]
    %s204 = sld [smem:[#allocation13 + $0x1b]]
    %s205 = sld [smem:[#allocation13 + $0x1c]]
    %s206 = sld [smem:[#allocation13 + $0x1d]]
    %s207 = sld [smem:[#allocation13 + $0x1e]]
    %s208 = sld [smem:[#allocation13 + $0x1f]]
    %s209 = sld [smem:[#allocation13 + $0x20]]
    %s210 = sld [smem:[#allocation13 + $0x21]]
    %s211 = sld [smem:[#allocation13 + $0x22]]
    %s212 = sld [smem:[#allocation13 + $0x23]]
    %s213 = sld [smem:[#allocation13 + $0x24]]
    %s214 = sld [smem:[#allocation13 + $0x25]]
    %s215 = sld [smem:[#allocation13 + $0x26]]
    %s216 = sld [smem:[#allocation13 + $0x27]]
    %s217 = sld [smem:[#allocation13 + $0x28]]
    %s218 = sld [smem:[#allocation13 + $0x29]]
    %s219 = sld [smem:[#allocation13 + $0x2a]]
    %s220 = sld [smem:[#allocation13 + $0x2b]]
    %s221 = sld [smem:[#allocation13 + $0x2c]]
    %s222 = sld [smem:[#allocation13 + $0x2d]]
    %s223 = sld [smem:[#allocation13 + $0x2e]]
    %s224 = sld [smem:[#allocation13 + $0x2f]]
    %s225 = sld [smem:[#allocation13 + $0x30]]
    %s226 = sld [smem:[#allocation13 + $0x31]]
    %s227 = sld [smem:[#allocation13 + $0x32]]
    %s228 = sld [smem:[#allocation13 + $0x33]]
    %s229 = sld [smem:[#allocation13 + $0x34]]
    %s230 = sld [smem:[#allocation13 + $0x35]]
    %s231 = sld [smem:[#allocation13 + $0x36]]
    %s232 = sld [smem:[#allocation13 + $0x37]]
    %s233 = sld [smem:[#allocation13 + $0x38]]
    %s234 = sld [smem:[#allocation13 + $0x39]]
    %s235 = sld [smem:[#allocation13 + $0x3a]]
    %s236 = sld [smem:[#allocation13 + $0x3b]]
    %s237 = sld [smem:[#allocation13 + $0x3c]]
    %s238 = sld [smem:[#allocation13 + $0x3d]]
    %s239 = sld [smem:[#allocation13 + $0x3e]]
    %s240 = sld [smem:[#allocation13 + $0x3f]]
    %s241 = sld [smem:[#allocation13 + $0x40]]
    %s242 = sld [smem:[#allocation13 + $0x41]]
    %s243 = sld [smem:[#allocation13 + $0x42]]
    %s244 = sld [smem:[#allocation13 + $0x43]]
    %s245 = sld [smem:[#allocation13 + $0x44]]
    %s246 = sld [smem:[#allocation13 + $0x45]]
    %s247 = sld [smem:[#allocation13 + $0x46]]
    %s248 = sld [smem:[#allocation13 + $0x47]]
    %s249 = sld [smem:[#allocation13 + $0x48]]
    %s250 = sld [smem:[#allocation13 + $0x49]]
    %s251 = sld [smem:[#allocation13 + $0x4a]]
    %s252 = sld [smem:[#allocation13 + $0x4b]]
    %s253 = sld [smem:[#allocation13 + $0x4c]]
    %s254 = sld [smem:[#allocation13 + $0x4d]]
    %s255 = sld [smem:[#allocation13 + $0x4e]]
    %s256 = sld [smem:[#allocation13 + $0x4f]]
    %s257 = sld [smem:[#allocation13 + $0x50]]
    %s258 = sld [smem:[#allocation13 + $0x51]]
    %s259 = sld [smem:[#allocation13 + $0x52]]
    %s260 = sld [smem:[#allocation13 + $0x53]]
    %s261 = sld [smem:[#allocation13 + $0x54]]
    %s262 = sld [smem:[#allocation13 + $0x55]]
    %s263 = sld [smem:[#allocation13 + $0x56]]
    %s264 = sld [smem:[#allocation13 + $0x57]]
    %s265 = sld [smem:[#allocation13 + $0x58]]
    %s266 = sld [smem:[#allocation13 + $0x59]]
    %s267 = sld [smem:[#allocation13 + $0x5a]]
    %s268 = sld [smem:[#allocation13 + $0x5b]]
    %s269 = sld [smem:[#allocation13 + $0x5c]]
    %s270 = sld [smem:[#allocation13 + $0x5d]]
    %s271 = sld [smem:[#allocation13 + $0x5e]]
    %s272 = sld [smem:[#allocation13 + $0x5f]]
    %s273 = sld [smem:[#allocation13 + $0x60]]
    %s274 = sld [smem:[#allocation13 + $0x61]]
    %s275 = sld [smem:[#allocation13 + $0x62]]
    %s276 = sld [smem:[#allocation13 + $0x63]]
    %s277 = sld [smem:[#allocation14]]
    %s278 = sld [smem:[#allocation14 + $0x1]]
    %s279 = sld [smem:[#allocation14 + $0x2]]
    %s280 = sld [smem:[#allocation14 + $0x3]]
    %s281 = sld [smem:[#allocation14 + $0x4]]
    %s282 = sld [smem:[#allocation14 + $0x5]]
    %s283 = sld [smem:[#allocation14 + $0x6]]
    %s284 = sld [smem:[#allocation14 + $0x7]]
    %s285 = sld [smem:[#allocation14 + $0x8]]
    %s286 = sld [smem:[#allocation14 + $0x9]]
    %s287 = sld [smem:[#allocation16]]
    %s288 = sld [smem:[#allocation16 + $0x1]]
    %s289 = sld [smem:[#allocation16 + $0x2]]
    %s290 = sld [smem:[#allocation16 + $0x3]]
    %s291 = sld [smem:[#allocation16 + $0x4]]
    %s292 = sld [smem:[#allocation16 + $0x5]]
    %s293 = sld [smem:[#allocation16 + $0x6]]
    %s294 = sld [smem:[#allocation16 + $0x7]]
    %s295 = sld [smem:[#allocation16 + $0x8]]
    %s296 = sld [smem:[#allocation16 + $0x9]]
    %s297 = sld [smem:[#allocation2]]
    %s298 = sld [smem:[#allocation17]]
    %s299 = sld [smem:[#allocation17 + $0x1]]
    %s300 = sld [smem:[#allocation17 + $0x2]]
    %s301 = sld [smem:[#allocation17 + $0x3]]
    %s302 = sld [smem:[#allocation17 + $0x4]]
    %s303 = sld [smem:[#allocation17 + $0x5]]
    %s304 = sld [smem:[#allocation17 + $0x6]]
    %s305 = sld [smem:[#allocation17 + $0x7]]
    %s306 = sld [smem:[#allocation17 + $0x8]]
    %s307 = sld [smem:[#allocation17 + $0x9]]
    %s308 = sld [smem:[#allocation3]]
    %s309 = sld [smem:[#allocation19]]
    %s310 = sld [smem:[#allocation19 + $0x1]]
    %s311 = sld [smem:[#allocation19 + $0x2]]
    %s312 = sld [smem:[#allocation19 + $0x3]]
    %s313 = sld [smem:[#allocation19 + $0x4]]
    %s314 = sld [smem:[#allocation19 + $0x5]]
    %s315 = sld [smem:[#allocation19 + $0x6]]
    %s316 = sld [smem:[#allocation19 + $0x7]]
    %s317 = sld [smem:[#allocation19 + $0x8]]
    %s318 = sld [smem:[#allocation19 + $0x9]]
    %s319 = sld [smem:[#allocation4]]
    %s320 = sld [smem:[#allocation20]]
    %s321 = sld [smem:[#allocation20 + $0x1]]
    %s322 = sld [smem:[#allocation20 + $0x2]]
    %s323 = sld [smem:[#allocation20 + $0x3]]
    %s324 = sld [smem:[#allocation20 + $0x4]]
    %s325 = sld [smem:[#allocation20 + $0x5]]
    %s326 = sld [smem:[#allocation20 + $0x6]]
    %s327 = sld [smem:[#allocation20 + $0x7]]
    %s328 = sld [smem:[#allocation20 + $0x8]]
    %s329 = sld [smem:[#allocation20 + $0x9]]
    %s330 = sld [smem:[#allocation5]]
    %v331 = vld [vmem:[#allocation6] sm:$0xff]
    %v332 = vld [vmem:[#allocation6 + $0x8] sm:$0xff]
    %v333 = vstv %s157
    %v334 = vmul.f32 %v331, %v333
    %v335 = vmul.f32 %v332, %v333
    %v336 = vstv %s167
    %v337 = vadd.f32 %v334, %v336
    %v338 = vadd.f32 %v335, %v336
    %v339 = vmax.f32 %v337, 0.0
    %v340 = vmax.f32 %v338, 0.0
    %v341 = vand.u32 2147483647, %v337
    %v342 = vand.u32 2147483647, %v338
    %v343 = vsub.f32 0.0, %v341
    %v344 = vsub.f32 0.0, %v342
    %v345 = vmul.f32 %v343, 1.442695
    %v346 = vpow.pop %v345
    %v347 = vmul.f32 %v344, 1.442695
    %v348 = vpow.pop %v347
    %v349 = vadd.f32 %v346, 1.0
    %v350 = vlog2.pop %v349
    %v351 = vmul.f32 %v350, 0.6931472
    %v352 = vmul.f32 -0.5, %v346
    %v353 = vadd.f32 %v352, 1.0
    %v354 = vmul.f32 %v353, %v346
    %v355 = vand.u32 2147483647, %v346
    %vm356 = vcmp.lt.f32.partialorder %v355, 0.0004427343
    %v357 = vsel %vm356, %v354, %v351
    %v358 = vadd.f32 %v348, 1.0
    %v359 = vlog2.pop %v358
    %v360 = vmul.f32 %v359, 0.6931472
    %v361 = vmul.f32 -0.5, %v348
    %v362 = vadd.f32 %v361, 1.0
    %v363 = vmul.f32 %v362, %v348
    %v364 = vand.u32 2147483647, %v348
    %vm365 = vcmp.lt.f32.partialorder %v364, 0.0004427343
    %v366 = vsel %vm365, %v363, %v360
    %v367 = vadd.f32 %v339, %v357
    %v368 = vadd.f32 %v340, %v366
    %v369 = vstv %s158
    %v370 = vmul.f32 %v331, %v369
    %v371 = vmul.f32 %v332, %v369
    %v372 = vstv %s168
    %v373 = vadd.f32 %v370, %v372
    %v374 = vadd.f32 %v371, %v372
    %v375 = vmax.f32 %v373, 0.0
    %v376 = vmax.f32 %v374, 0.0
    %v377 = vand.u32 2147483647, %v373
    %v378 = vand.u32 2147483647, %v374
    %v379 = vsub.f32 0.0, %v377
    %v380 = vsub.f32 0.0, %v378
    %v381 = vmul.f32 %v379, 1.442695
    %v382 = vpow.pop %v381
    %v383 = vmul.f32 %v380, 1.442695
    %v384 = vpow.pop %v383
    %v385 = vadd.f32 %v382, 1.0
    %v386 = vlog2.pop %v385
    %v387 = vmul.f32 %v386, 0.6931472
    %v388 = vmul.f32 -0.5, %v382
    %v389 = vadd.f32 %v388, 1.0
    %v390 = vmul.f32 %v389, %v382
    %v391 = vand.u32 2147483647, %v382
    %vm392 = vcmp.lt.f32.partialorder %v391, 0.0004427343
    %v393 = vsel %vm392, %v390, %v387
    %v394 = vadd.f32 %v384, 1.0
    %v395 = vlog2.pop %v394
    %v396 = vmul.f32 %v395, 0.6931472
    %v397 = vmul.f32 -0.5, %v384
    %v398 = vadd.f32 %v397, 1.0
    %v399 = vmul.f32 %v398, %v384
    %v400 = vand.u32 2147483647, %v384
    %vm401 = vcmp.lt.f32.partialorder %v400, 0.0004427343
    %v402 = vsel %vm401, %v399, %v396
    %v403 = vadd.f32 %v375, %v393
    %v404 = vadd.f32 %v376, %v402
    %v405 = vstv %s159
    %v406 = vmul.f32 %v331, %v405
    %v407 = vmul.f32 %v332, %v405
    %v408 = vstv %s169
    %v409 = vadd.f32 %v406, %v408
    %v410 = vadd.f32 %v407, %v408
    %v411 = vmax.f32 %v409, 0.0
    %v412 = vmax.f32 %v410, 0.0
    %v413 = vand.u32 2147483647, %v409
    %v414 = vand.u32 2147483647, %v410
    %v415 = vsub.f32 0.0, %v413
    %v416 = vsub.f32 0.0, %v414
    %v417 = vmul.f32 %v415, 1.442695
    %v418 = vpow.pop %v417
    %v419 = vmul.f32 %v416, 1.442695
    %v420 = vpow.pop %v419
    %v421 = vadd.f32 %v418, 1.0
    %v422 = vlog2.pop %v421
    %v423 = vmul.f32 %v422, 0.6931472
    %v424 = vmul.f32 -0.5, %v418
    %v425 = vadd.f32 %v424, 1.0
    %v426 = vmul.f32 %v425, %v418
    %v427 = vand.u32 2147483647, %v418
    %vm428 = vcmp.lt.f32.partialorder %v427, 0.0004427343
    %v429 = vsel %vm428, %v426, %v423
    %v430 = vadd.f32 %v420, 1.0
    %v431 = vlog2.pop %v430
    %v432 = vmul.f32 %v431, 0.6931472
    %v433 = vmul.f32 -0.5, %v420
    %v434 = vadd.f32 %v433, 1.0
    %v435 = vmul.f32 %v434, %v420
    %v436 = vand.u32 2147483647, %v420
    %vm437 = vcmp.lt.f32.partialorder %v436, 0.0004427343
    %v438 = vsel %vm437, %v435, %v432
    %v439 = vadd.f32 %v411, %v429
    %v440 = vadd.f32 %v412, %v438
    %v441 = vstv %s160
    %v442 = vmul.f32 %v331, %v441
    %v443 = vmul.f32 %v332, %v441
    %v444 = vstv %s170
    %v445 = vadd.f32 %v442, %v444
    %v446 = vadd.f32 %v443, %v444
    %v447 = vmax.f32 %v445, 0.0
    %v448 = vmax.f32 %v446, 0.0
    %v449 = vand.u32 2147483647, %v445
    %v450 = vand.u32 2147483647, %v446
    %v451 = vsub.f32 0.0, %v449
    %v452 = vsub.f32 0.0, %v450
    %v453 = vmul.f32 %v451, 1.442695
    %v454 = vpow.pop %v453
    %v455 = vmul.f32 %v452, 1.442695
    %v456 = vpow.pop %v455
    %v457 = vadd.f32 %v454, 1.0
    %v458 = vlog2.pop %v457
    %v459 = vmul.f32 %v458, 0.6931472
    %v460 = vmul.f32 -0.5, %v454
    %v461 = vadd.f32 %v460, 1.0
    %v462 = vmul.f32 %v461, %v454
    %v463 = vand.u32 2147483647, %v454
    %vm464 = vcmp.lt.f32.partialorder %v463, 0.0004427343
    %v465 = vsel %vm464, %v462, %v459
    %v466 = vadd.f32 %v456, 1.0
    %v467 = vlog2.pop %v466
    %v468 = vmul.f32 %v467, 0.6931472
    %v469 = vmul.f32 -0.5, %v456
    %v470 = vadd.f32 %v469, 1.0
    %v471 = vmul.f32 %v470, %v456
    %v472 = vand.u32 2147483647, %v456
    %vm473 = vcmp.lt.f32.partialorder %v472, 0.0004427343
    %v474 = vsel %vm473, %v471, %v468
    %v475 = vadd.f32 %v447, %v465
    %v476 = vadd.f32 %v448, %v474
    %v477 = vstv %s161
    %v478 = vmul.f32 %v331, %v477
    %v479 = vmul.f32 %v332, %v477
    %v480 = vstv %s171
    %v481 = vadd.f32 %v478, %v480
    %v482 = vadd.f32 %v479, %v480
    %v483 = vmax.f32 %v481, 0.0
    %v484 = vmax.f32 %v482, 0.0
    %v485 = vand.u32 2147483647, %v481
    %v486 = vand.u32 2147483647, %v482
    %v487 = vsub.f32 0.0, %v485
    %v488 = vsub.f32 0.0, %v486
    %v489 = vmul.f32 %v487, 1.442695
    %v490 = vpow.pop %v489
    %v491 = vmul.f32 %v488, 1.442695
    %v492 = vpow.pop %v491
    %v493 = vadd.f32 %v490, 1.0
    %v494 = vlog2.pop %v493
    %v495 = vmul.f32 %v494, 0.6931472
    %v496 = vmul.f32 -0.5, %v490
    %v497 = vadd.f32 %v496, 1.0
    %v498 = vmul.f32 %v497, %v490
    %v499 = vand.u32 2147483647, %v490
    %vm500 = vcmp.lt.f32.partialorder %v499, 0.0004427343
    %v501 = vsel %vm500, %v498, %v495
    %v502 = vadd.f32 %v492, 1.0
    %v503 = vlog2.pop %v502
    %v504 = vmul.f32 %v503, 0.6931472
    %v505 = vmul.f32 -0.5, %v492
    %v506 = vadd.f32 %v505, 1.0
    %v507 = vmul.f32 %v506, %v492
    %v508 = vand.u32 2147483647, %v492
    %vm509 = vcmp.lt.f32.partialorder %v508, 0.0004427343
    %v510 = vsel %vm509, %v507, %v504
    %v511 = vadd.f32 %v483, %v501
    %v512 = vadd.f32 %v484, %v510
    %v513 = vstv %s162
    %v514 = vmul.f32 %v331, %v513
    %v515 = vmul.f32 %v332, %v513
    %v516 = vstv %s172
    %v517 = vadd.f32 %v514, %v516
    %v518 = vadd.f32 %v515, %v516
    %v519 = vmax.f32 %v517, 0.0
    %v520 = vmax.f32 %v518, 0.0
    %v521 = vand.u32 2147483647, %v517
    %v522 = vand.u32 2147483647, %v518
    %v523 = vsub.f32 0.0, %v521
    %v524 = vsub.f32 0.0, %v522
    %v525 = vmul.f32 %v523, 1.442695
    %v526 = vpow.pop %v525
    %v527 = vmul.f32 %v524, 1.442695
    %v528 = vpow.pop %v527
    %v529 = vadd.f32 %v526, 1.0
    %v530 = vlog2.pop %v529
    %v531 = vmul.f32 %v530, 0.6931472
    %v532 = vmul.f32 -0.5, %v526
    %v533 = vadd.f32 %v532, 1.0
    %v534 = vmul.f32 %v533, %v526
    %v535 = vand.u32 2147483647, %v526
    %vm536 = vcmp.lt.f32.partialorder %v535, 0.0004427343
    %v537 = vsel %vm536, %v534, %v531
    %v538 = vadd.f32 %v528, 1.0
    %v539 = vlog2.pop %v538
    %v540 = vmul.f32 %v539, 0.6931472
    %v541 = vmul.f32 -0.5, %v528
    %v542 = vadd.f32 %v541, 1.0
    %v543 = vmul.f32 %v542, %v528
    %v544 = vand.u32 2147483647, %v528
    %vm545 = vcmp.lt.f32.partialorder %v544, 0.0004427343
    %v546 = vsel %vm545, %v543, %v540
    %v547 = vadd.f32 %v519, %v537
    %v548 = vadd.f32 %v520, %v546
    %v549 = vstv %s163
    %v550 = vmul.f32 %v331, %v549
    %v551 = vmul.f32 %v332, %v549
    %v552 = vstv %s173
    %v553 = vadd.f32 %v550, %v552
    %v554 = vadd.f32 %v551, %v552
    %v555 = vmax.f32 %v553, 0.0
    %v556 = vmax.f32 %v554, 0.0
    %v557 = vand.u32 2147483647, %v553
    %v558 = vand.u32 2147483647, %v554
    %v559 = vsub.f32 0.0, %v557
    %v560 = vsub.f32 0.0, %v558
    %v561 = vmul.f32 %v559, 1.442695
    %v562 = vpow.pop %v561
    %v563 = vmul.f32 %v560, 1.442695
    %v564 = vpow.pop %v563
    %v565 = vadd.f32 %v562, 1.0
    %v566 = vlog2.pop %v565
    %v567 = vmul.f32 %v566, 0.6931472
    %v568 = vmul.f32 -0.5, %v562
    %v569 = vadd.f32 %v568, 1.0
    %v570 = vmul.f32 %v569, %v562
    %v571 = vand.u32 2147483647, %v562
    %vm572 = vcmp.lt.f32.partialorder %v571, 0.0004427343
    %v573 = vsel %vm572, %v570, %v567
    %v574 = vadd.f32 %v564, 1.0
    %v575 = vlog2.pop %v574
    %v576 = vmul.f32 %v575, 0.6931472
    %v577 = vmul.f32 -0.5, %v564
    %v578 = vadd.f32 %v577, 1.0
    %v579 = vmul.f32 %v578, %v564
    %v580 = vand.u32 2147483647, %v564
    %vm581 = vcmp.lt.f32.partialorder %v580, 0.0004427343
    %v582 = vsel %vm581, %v579, %v576
    %v583 = vadd.f32 %v555, %v573
    %v584 = vadd.f32 %v556, %v582
    %v585 = vstv %s164
    %v586 = vmul.f32 %v331, %v585
    %v587 = vmul.f32 %v332, %v585
    %v588 = vstv %s174
    %v589 = vadd.f32 %v586, %v588
    %v590 = vadd.f32 %v587, %v588
    %v591 = vmax.f32 %v589, 0.0
    %v592 = vmax.f32 %v590, 0.0
    %v593 = vand.u32 2147483647, %v589
    %v594 = vand.u32 2147483647, %v590
    %v595 = vsub.f32 0.0, %v593
    %v596 = vsub.f32 0.0, %v594
    %v597 = vmul.f32 %v595, 1.442695
    %v598 = vpow.pop %v597
    %v599 = vmul.f32 %v596, 1.442695
    %v600 = vpow.pop %v599
    %v601 = vadd.f32 %v598, 1.0
    %v602 = vlog2.pop %v601
    %v603 = vmul.f32 %v602, 0.6931472
    %v604 = vmul.f32 -0.5, %v598
    %v605 = vadd.f32 %v604, 1.0
    %v606 = vmul.f32 %v605, %v598
    %v607 = vand.u32 2147483647, %v598
    %vm608 = vcmp.lt.f32.partialorder %v607, 0.0004427343
    %v609 = vsel %vm608, %v606, %v603
    %v610 = vadd.f32 %v600, 1.0
    %v611 = vlog2.pop %v610
    %v612 = vmul.f32 %v611, 0.6931472
    %v613 = vmul.f32 -0.5, %v600
    %v614 = vadd.f32 %v613, 1.0
    %v615 = vmul.f32 %v614, %v600
    %v616 = vand.u32 2147483647, %v600
    %vm617 = vcmp.lt.f32.partialorder %v616, 0.0004427343
    %v618 = vsel %vm617, %v615, %v612
    %v619 = vadd.f32 %v591, %v609
    %v620 = vadd.f32 %v592, %v618
    %v621 = vstv %s165
    %v622 = vmul.f32 %v331, %v621
    %v623 = vmul.f32 %v332, %v621
    %v624 = vstv %s175
    %v625 = vadd.f32 %v622, %v624
    %v626 = vadd.f32 %v623, %v624
    %v627 = vmax.f32 %v625, 0.0
    %v628 = vmax.f32 %v626, 0.0
    %v629 = vand.u32 2147483647, %v625
    %v630 = vand.u32 2147483647, %v626
    %v631 = vsub.f32 0.0, %v629
    %v632 = vsub.f32 0.0, %v630
    %v633 = vmul.f32 %v631, 1.442695
    %v634 = vpow.pop %v633
    %v635 = vmul.f32 %v632, 1.442695
    %v636 = vpow.pop %v635
    %v637 = vadd.f32 %v634, 1.0
    %v638 = vlog2.pop %v637
    %v639 = vmul.f32 %v638, 0.6931472
    %v640 = vmul.f32 -0.5, %v634
    %v641 = vadd.f32 %v640, 1.0
    %v642 = vmul.f32 %v641, %v634
    %v643 = vand.u32 2147483647, %v634
    %vm644 = vcmp.lt.f32.partialorder %v643, 0.0004427343
    %v645 = vsel %vm644, %v642, %v639
    %v646 = vadd.f32 %v636, 1.0
    %v647 = vlog2.pop %v646
    %v648 = vmul.f32 %v647, 0.6931472
    %v649 = vmul.f32 -0.5, %v636
    %v650 = vadd.f32 %v649, 1.0
    %v651 = vmul.f32 %v650, %v636
    %v652 = vand.u32 2147483647, %v636
    %vm653 = vcmp.lt.f32.partialorder %v652, 0.0004427343
    %v654 = vsel %vm653, %v651, %v648
    %v655 = vadd.f32 %v627, %v645
    %v656 = vadd.f32 %v628, %v654
    %v657 = vstv %s166
    %v658 = vmul.f32 %v331, %v657
    %v659 = vmul.f32 %v332, %v657
    %v660 = vstv %s176
    %v661 = vadd.f32 %v658, %v660
    %v662 = vadd.f32 %v659, %v660
    %v663 = vmax.f32 %v661, 0.0
    %v664 = vmax.f32 %v662, 0.0
    %v665 = vand.u32 2147483647, %v661
    %v666 = vand.u32 2147483647, %v662
    %v667 = vsub.f32 0.0, %v665
    %v668 = vsub.f32 0.0, %v666
    %v669 = vmul.f32 %v667, 1.442695
    %v670 = vpow.pop %v669
    %v671 = vmul.f32 %v668, 1.442695
    %v672 = vpow.pop %v671
    %v673 = vadd.f32 %v670, 1.0
    %v674 = vlog2.pop %v673
    %v675 = vmul.f32 %v674, 0.6931472
    %v676 = vmul.f32 -0.5, %v670
    %v677 = vadd.f32 %v676, 1.0
    %v678 = vmul.f32 %v677, %v670
    %v679 = vand.u32 2147483647, %v670
    %vm680 = vcmp.lt.f32.partialorder %v679, 0.0004427343
    %v681 = vsel %vm680, %v678, %v675
    %v682 = vadd.f32 %v672, 1.0
    %v683 = vlog2.pop %v682
    %v684 = vmul.f32 %v683, 0.6931472
    %v685 = vmul.f32 -0.5, %v672
    %v686 = vadd.f32 %v685, 1.0
    %v687 = vmul.f32 %v686, %v672
    %v688 = vand.u32 2147483647, %v672
    %vm689 = vcmp.lt.f32.partialorder %v688, 0.0004427343
    %v690 = vsel %vm689, %v687, %v684
    %v691 = vadd.f32 %v663, %v681
    %v692 = vadd.f32 %v664, %v690
    %v693 = vstv %s177
    %v694 = vmul.f32 %v367, %v693
    %v695 = vmul.f32 %v368, %v693
    %v696 = vstv %s187
    %v697 = vmul.f32 %v403, %v696
    %v698 = vmul.f32 %v404, %v696
    %v699 = vstv %s197
    %v700 = vmul.f32 %v439, %v699
    %v701 = vmul.f32 %v440, %v699
    %v702 = vstv %s207
    %v703 = vmul.f32 %v475, %v702
    %v704 = vmul.f32 %v476, %v702
    %v705 = vstv %s217
    %v706 = vmul.f32 %v511, %v705
    %v707 = vmul.f32 %v512, %v705
    %v708 = vstv %s227
    %v709 = vmul.f32 %v547, %v708
    %v710 = vmul.f32 %v548, %v708
    %v711 = vstv %s237
    %v712 = vmul.f32 %v583, %v711
    %v713 = vmul.f32 %v584, %v711
    %v714 = vstv %s247
    %v715 = vmul.f32 %v619, %v714
    %v716 = vmul.f32 %v620, %v714
    %v717 = vstv %s257
    %v718 = vmul.f32 %v655, %v717
    %v719 = vmul.f32 %v656, %v717
    %v720 = vstv %s267
    %v721 = vmul.f32 %v691, %v720
    %v722 = vmul.f32 %v692, %v720
    %v723 = vadd.f32 %v694, %v697
    %v724 = vadd.f32 %v695, %v698
    %v725 = vadd.f32 %v700, %v703
    %v726 = vadd.f32 %v701, %v704
    %v727 = vadd.f32 %v706, %v709
    %v728 = vadd.f32 %v707, %v710
    %v729 = vadd.f32 %v712, %v715
    %v730 = vadd.f32 %v713, %v716
    %v731 = vadd.f32 %v718, %v721
    %v732 = vadd.f32 %v719, %v722
    %v733 = vadd.f32 %v723, %v725
    %v734 = vadd.f32 %v724, %v726
    %v735 = vadd.f32 %v727, %v729
    %v736 = vadd.f32 %v728, %v730
    %v737 = vadd.f32 %v733, %v735
    %v738 = vadd.f32 %v734, %v736
    %v739 = vadd.f32 %v737, %v731
    %v740 = vadd.f32 %v738, %v732
    %v741 = vstv %s277
    %v742 = vadd.f32 %v739, %v741
    %v743 = vadd.f32 %v740, %v741
    %v744 = vmax.f32 %v742, 0.0
    %v745 = vmax.f32 %v743, 0.0
    %v746 = vand.u32 2147483647, %v742
    %v747 = vand.u32 2147483647, %v743
    %v748 = vsub.f32 0.0, %v746
    %v749 = vsub.f32 0.0, %v747
    %v750 = vmul.f32 %v748, 1.442695
    %v751 = vpow.pop %v750
    %v752 = vmul.f32 %v749, 1.442695
    %v753 = vpow.pop %v752
    %v754 = vadd.f32 %v751, 1.0
    %v755 = vlog2.pop %v754
    %v756 = vmul.f32 %v755, 0.6931472
    %v757 = vmul.f32 -0.5, %v751
    %v758 = vadd.f32 %v757, 1.0
    %v759 = vmul.f32 %v758, %v751
    %v760 = vand.u32 2147483647, %v751
    %vm761 = vcmp.lt.f32.partialorder %v760, 0.0004427343
    %v762 = vsel %vm761, %v759, %v756
    %v763 = vadd.f32 %v753, 1.0
    %v764 = vlog2.pop %v763
    %v765 = vmul.f32 %v764, 0.6931472
    %v766 = vmul.f32 -0.5, %v753
    %v767 = vadd.f32 %v766, 1.0
    %v768 = vmul.f32 %v767, %v753
    %v769 = vand.u32 2147483647, %v753
    %vm770 = vcmp.lt.f32.partialorder %v769, 0.0004427343
    %v771 = vsel %vm770, %v768, %v765
    %v772 = vadd.f32 %v744, %v762
    %v773 = vadd.f32 %v745, %v771
    %v774 = vstv %s178
    %v775 = vmul.f32 %v367, %v774
    %v776 = vmul.f32 %v368, %v774
    %v777 = vstv %s188
    %v778 = vmul.f32 %v403, %v777
    %v779 = vmul.f32 %v404, %v777
    %v780 = vstv %s198
    %v781 = vmul.f32 %v439, %v780
    %v782 = vmul.f32 %v440, %v780
    %v783 = vstv %s208
    %v784 = vmul.f32 %v475, %v783
    %v785 = vmul.f32 %v476, %v783
    %v786 = vstv %s218
    %v787 = vmul.f32 %v511, %v786
    %v788 = vmul.f32 %v512, %v786
    %v789 = vstv %s228
    %v790 = vmul.f32 %v547, %v789
    %v791 = vmul.f32 %v548, %v789
    %v792 = vstv %s238
    %v793 = vmul.f32 %v583, %v792
    %v794 = vmul.f32 %v584, %v792
    %v795 = vstv %s248
    %v796 = vmul.f32 %v619, %v795
    %v797 = vmul.f32 %v620, %v795
    %v798 = vstv %s258
    %v799 = vmul.f32 %v655, %v798
    %v800 = vmul.f32 %v656, %v798
    %v801 = vstv %s268
    %v802 = vmul.f32 %v691, %v801
    %v803 = vmul.f32 %v692, %v801
    %v804 = vadd.f32 %v775, %v778
    %v805 = vadd.f32 %v776, %v779
    %v806 = vadd.f32 %v781, %v784
    %v807 = vadd.f32 %v782, %v785
    %v808 = vadd.f32 %v787, %v790
    %v809 = vadd.f32 %v788, %v791
    %v810 = vadd.f32 %v793, %v796
    %v811 = vadd.f32 %v794, %v797
    %v812 = vadd.f32 %v799, %v802
    %v813 = vadd.f32 %v800, %v803
    %v814 = vadd.f32 %v804, %v806
    %v815 = vadd.f32 %v805, %v807
    %v816 = vadd.f32 %v808, %v810
    %v817 = vadd.f32 %v809, %v811
    %v818 = vadd.f32 %v814, %v816
    %v819 = vadd.f32 %v815, %v817
    %v820 = vadd.f32 %v818, %v812
    %v821 = vadd.f32 %v819, %v813
    %v822 = vstv %s278
    %v823 = vadd.f32 %v820, %v822
    %v824 = vadd.f32 %v821, %v822
    %v825 = vmax.f32 %v823, 0.0
    %v826 = vmax.f32 %v824, 0.0
    %v827 = vand.u32 2147483647, %v823
    %v828 = vand.u32 2147483647, %v824
    %v829 = vsub.f32 0.0, %v827
    %v830 = vsub.f32 0.0, %v828
    %v831 = vmul.f32 %v829, 1.442695
    %v832 = vpow.pop %v831
    %v833 = vmul.f32 %v830, 1.442695
    %v834 = vpow.pop %v833
    %v835 = vadd.f32 %v832, 1.0
    %v836 = vlog2.pop %v835
    %v837 = vmul.f32 %v836, 0.6931472
    %v838 = vmul.f32 -0.5, %v832
    %v839 = vadd.f32 %v838, 1.0
    %v840 = vmul.f32 %v839, %v832
    %v841 = vand.u32 2147483647, %v832
    %vm842 = vcmp.lt.f32.partialorder %v841, 0.0004427343
    %v843 = vsel %vm842, %v840, %v837
    %v844 = vadd.f32 %v834, 1.0
    %v845 = vlog2.pop %v844
    %v846 = vmul.f32 %v845, 0.6931472
    %v847 = vmul.f32 -0.5, %v834
    %v848 = vadd.f32 %v847, 1.0
    %v849 = vmul.f32 %v848, %v834
    %v850 = vand.u32 2147483647, %v834
    %vm851 = vcmp.lt.f32.partialorder %v850, 0.0004427343
    %v852 = vsel %vm851, %v849, %v846
    %v853 = vadd.f32 %v825, %v843
    %v854 = vadd.f32 %v826, %v852
    %v855 = vstv %s179
    %v856 = vmul.f32 %v367, %v855
    %v857 = vmul.f32 %v368, %v855
    %v858 = vstv %s189
    %v859 = vmul.f32 %v403, %v858
    %v860 = vmul.f32 %v404, %v858
    %v861 = vstv %s199
    %v862 = vmul.f32 %v439, %v861
    %v863 = vmul.f32 %v440, %v861
    %v864 = vstv %s209
    %v865 = vmul.f32 %v475, %v864
    %v866 = vmul.f32 %v476, %v864
    %v867 = vstv %s219
    %v868 = vmul.f32 %v511, %v867
    %v869 = vmul.f32 %v512, %v867
    %v870 = vstv %s229
    %v871 = vmul.f32 %v547, %v870
    %v872 = vmul.f32 %v548, %v870
    %v873 = vstv %s239
    %v874 = vmul.f32 %v583, %v873
    %v875 = vmul.f32 %v584, %v873
    %v876 = vstv %s249
    %v877 = vmul.f32 %v619, %v876
    %v878 = vmul.f32 %v620, %v876
    %v879 = vstv %s259
    %v880 = vmul.f32 %v655, %v879
    %v881 = vmul.f32 %v656, %v879
    %v882 = vstv %s269
    %v883 = vmul.f32 %v691, %v882
    %v884 = vmul.f32 %v692, %v882
    %v885 = vadd.f32 %v856, %v859
    %v886 = vadd.f32 %v857, %v860
    %v887 = vadd.f32 %v862, %v865
    %v888 = vadd.f32 %v863, %v866
    %v889 = vadd.f32 %v868, %v871
    %v890 = vadd.f32 %v869, %v872
    %v891 = vadd.f32 %v874, %v877
    %v892 = vadd.f32 %v875, %v878
    %v893 = vadd.f32 %v880, %v883
    %v894 = vadd.f32 %v881, %v884
    %v895 = vadd.f32 %v885, %v887
    %v896 = vadd.f32 %v886, %v888
    %v897 = vadd.f32 %v889, %v891
    %v898 = vadd.f32 %v890, %v892
    %v899 = vadd.f32 %v895, %v897
    %v900 = vadd.f32 %v896, %v898
    %v901 = vadd.f32 %v899, %v893
    %v902 = vadd.f32 %v900, %v894
    %v903 = vstv %s279
    %v904 = vadd.f32 %v901, %v903
    %v905 = vadd.f32 %v902, %v903
    %v906 = vmax.f32 %v904, 0.0
    %v907 = vmax.f32 %v905, 0.0
    %v908 = vand.u32 2147483647, %v904
    %v909 = vand.u32 2147483647, %v905
    %v910 = vsub.f32 0.0, %v908
    %v911 = vsub.f32 0.0, %v909
    %v912 = vmul.f32 %v910, 1.442695
    %v913 = vpow.pop %v912
    %v914 = vmul.f32 %v911, 1.442695
    %v915 = vpow.pop %v914
    %v916 = vadd.f32 %v913, 1.0
    %v917 = vlog2.pop %v916
    %v918 = vmul.f32 %v917, 0.6931472
    %v919 = vmul.f32 -0.5, %v913
    %v920 = vadd.f32 %v919, 1.0
    %v921 = vmul.f32 %v920, %v913
    %v922 = vand.u32 2147483647, %v913
    %vm923 = vcmp.lt.f32.partialorder %v922, 0.0004427343
    %v924 = vsel %vm923, %v921, %v918
    %v925 = vadd.f32 %v915, 1.0
    %v926 = vlog2.pop %v925
    %v927 = vmul.f32 %v926, 0.6931472
    %v928 = vmul.f32 -0.5, %v915
    %v929 = vadd.f32 %v928, 1.0
    %v930 = vmul.f32 %v929, %v915
    %v931 = vand.u32 2147483647, %v915
    %vm932 = vcmp.lt.f32.partialorder %v931, 0.0004427343
    %v933 = vsel %vm932, %v930, %v927
    %v934 = vadd.f32 %v906, %v924
    %v935 = vadd.f32 %v907, %v933
    %v936 = vstv %s180
    %v937 = vmul.f32 %v367, %v936
    %v938 = vmul.f32 %v368, %v936
    %v939 = vstv %s190
    %v940 = vmul.f32 %v403, %v939
    %v941 = vmul.f32 %v404, %v939
    %v942 = vstv %s200
    %v943 = vmul.f32 %v439, %v942
    %v944 = vmul.f32 %v440, %v942
    %v945 = vstv %s210
    %v946 = vmul.f32 %v475, %v945
    %v947 = vmul.f32 %v476, %v945
    %v948 = vstv %s220
    %v949 = vmul.f32 %v511, %v948
    %v950 = vmul.f32 %v512, %v948
    %v951 = vstv %s230
    %v952 = vmul.f32 %v547, %v951
    %v953 = vmul.f32 %v548, %v951
    %v954 = vstv %s240
    %v955 = vmul.f32 %v583, %v954
    %v956 = vmul.f32 %v584, %v954
    %v957 = vstv %s250
    %v958 = vmul.f32 %v619, %v957
    %v959 = vmul.f32 %v620, %v957
    %v960 = vstv %s260
    %v961 = vmul.f32 %v655, %v960
    %v962 = vmul.f32 %v656, %v960
    %v963 = vstv %s270
    %v964 = vmul.f32 %v691, %v963
    %v965 = vmul.f32 %v692, %v963
    %v966 = vadd.f32 %v937, %v940
    %v967 = vadd.f32 %v938, %v941
    %v968 = vadd.f32 %v943, %v946
    %v969 = vadd.f32 %v944, %v947
    %v970 = vadd.f32 %v949, %v952
    %v971 = vadd.f32 %v950, %v953
    %v972 = vadd.f32 %v955, %v958
    %v973 = vadd.f32 %v956, %v959
    %v974 = vadd.f32 %v961, %v964
    %v975 = vadd.f32 %v962, %v965
    %v976 = vadd.f32 %v966, %v968
    %v977 = vadd.f32 %v967, %v969
    %v978 = vadd.f32 %v970, %v972
    %v979 = vadd.f32 %v971, %v973
    %v980 = vadd.f32 %v976, %v978
    %v981 = vadd.f32 %v977, %v979
    %v982 = vadd.f32 %v980, %v974
    %v983 = vadd.f32 %v981, %v975
    %v984 = vstv %s280
    %v985 = vadd.f32 %v982, %v984
    %v986 = vadd.f32 %v983, %v984
    %v987 = vmax.f32 %v985, 0.0
    %v988 = vmax.f32 %v986, 0.0
    %v989 = vand.u32 2147483647, %v985
    %v990 = vand.u32 2147483647, %v986
    %v991 = vsub.f32 0.0, %v989
    %v992 = vsub.f32 0.0, %v990
    %v993 = vmul.f32 %v991, 1.442695
    %v994 = vpow.pop %v993
    %v995 = vmul.f32 %v992, 1.442695
    %v996 = vpow.pop %v995
    %v997 = vadd.f32 %v994, 1.0
    %v998 = vlog2.pop %v997
    %v999 = vmul.f32 %v998, 0.6931472
    %v1000 = vmul.f32 -0.5, %v994
    %v1001 = vadd.f32 %v1000, 1.0
    %v1002 = vmul.f32 %v1001, %v994
    %v1003 = vand.u32 2147483647, %v994
    %vm1004 = vcmp.lt.f32.partialorder %v1003, 0.0004427343
    %v1005 = vsel %vm1004, %v1002, %v999
    %v1006 = vadd.f32 %v996, 1.0
    %v1007 = vlog2.pop %v1006
    %v1008 = vmul.f32 %v1007, 0.6931472
    %v1009 = vmul.f32 -0.5, %v996
    %v1010 = vadd.f32 %v1009, 1.0
    %v1011 = vmul.f32 %v1010, %v996
    %v1012 = vand.u32 2147483647, %v996
    %vm1013 = vcmp.lt.f32.partialorder %v1012, 0.0004427343
    %v1014 = vsel %vm1013, %v1011, %v1008
    %v1015 = vadd.f32 %v987, %v1005
    %v1016 = vadd.f32 %v988, %v1014
    %v1017 = vstv %s181
    %v1018 = vmul.f32 %v367, %v1017
    %v1019 = vmul.f32 %v368, %v1017
    %v1020 = vstv %s191
    %v1021 = vmul.f32 %v403, %v1020
    %v1022 = vmul.f32 %v404, %v1020
    %v1023 = vstv %s201
    %v1024 = vmul.f32 %v439, %v1023
    %v1025 = vmul.f32 %v440, %v1023
    %v1026 = vstv %s211
    %v1027 = vmul.f32 %v475, %v1026
    %v1028 = vmul.f32 %v476, %v1026
    %v1029 = vstv %s221
    %v1030 = vmul.f32 %v511, %v1029
    %v1031 = vmul.f32 %v512, %v1029
    %v1032 = vstv %s231
    %v1033 = vmul.f32 %v547, %v1032
    %v1034 = vmul.f32 %v548, %v1032
    %v1035 = vstv %s241
    %v1036 = vmul.f32 %v583, %v1035
    %v1037 = vmul.f32 %v584, %v1035
    %v1038 = vstv %s251
    %v1039 = vmul.f32 %v619, %v1038
    %v1040 = vmul.f32 %v620, %v1038
    %v1041 = vstv %s261
    %v1042 = vmul.f32 %v655, %v1041
    %v1043 = vmul.f32 %v656, %v1041
    %v1044 = vstv %s271
    %v1045 = vmul.f32 %v691, %v1044
    %v1046 = vmul.f32 %v692, %v1044
    %v1047 = vadd.f32 %v1018, %v1021
    %v1048 = vadd.f32 %v1019, %v1022
    %v1049 = vadd.f32 %v1024, %v1027
    %v1050 = vadd.f32 %v1025, %v1028
    %v1051 = vadd.f32 %v1030, %v1033
    %v1052 = vadd.f32 %v1031, %v1034
    %v1053 = vadd.f32 %v1036, %v1039
    %v1054 = vadd.f32 %v1037, %v1040
    %v1055 = vadd.f32 %v1042, %v1045
    %v1056 = vadd.f32 %v1043, %v1046
    %v1057 = vadd.f32 %v1047, %v1049
    %v1058 = vadd.f32 %v1048, %v1050
    %v1059 = vadd.f32 %v1051, %v1053
    %v1060 = vadd.f32 %v1052, %v1054
    %v1061 = vadd.f32 %v1057, %v1059
    %v1062 = vadd.f32 %v1058, %v1060
    %v1063 = vadd.f32 %v1061, %v1055
    %v1064 = vadd.f32 %v1062, %v1056
    %v1065 = vstv %s281
    %v1066 = vadd.f32 %v1063, %v1065
    %v1067 = vadd.f32 %v1064, %v1065
    %v1068 = vmax.f32 %v1066, 0.0
    %v1069 = vmax.f32 %v1067, 0.0
    %v1070 = vand.u32 2147483647, %v1066
    %v1071 = vand.u32 2147483647, %v1067
    %v1072 = vsub.f32 0.0, %v1070
    %v1073 = vsub.f32 0.0, %v1071
    %v1074 = vmul.f32 %v1072, 1.442695
    %v1075 = vpow.pop %v1074
    %v1076 = vmul.f32 %v1073, 1.442695
    %v1077 = vpow.pop %v1076
    %v1078 = vadd.f32 %v1075, 1.0
    %v1079 = vlog2.pop %v1078
    %v1080 = vmul.f32 %v1079, 0.6931472
    %v1081 = vmul.f32 -0.5, %v1075
    %v1082 = vadd.f32 %v1081, 1.0
    %v1083 = vmul.f32 %v1082, %v1075
    %v1084 = vand.u32 2147483647, %v1075
    %vm1085 = vcmp.lt.f32.partialorder %v1084, 0.0004427343
    %v1086 = vsel %vm1085, %v1083, %v1080
    %v1087 = vadd.f32 %v1077, 1.0
    %v1088 = vlog2.pop %v1087
    %v1089 = vmul.f32 %v1088, 0.6931472
    %v1090 = vmul.f32 -0.5, %v1077
    %v1091 = vadd.f32 %v1090, 1.0
    %v1092 = vmul.f32 %v1091, %v1077
    %v1093 = vand.u32 2147483647, %v1077
    %vm1094 = vcmp.lt.f32.partialorder %v1093, 0.0004427343
    %v1095 = vsel %vm1094, %v1092, %v1089
    %v1096 = vadd.f32 %v1068, %v1086
    %v1097 = vadd.f32 %v1069, %v1095
    %v1098 = vstv %s182
    %v1099 = vmul.f32 %v367, %v1098
    %v1100 = vmul.f32 %v368, %v1098
    %v1101 = vstv %s192
    %v1102 = vmul.f32 %v403, %v1101
    %v1103 = vmul.f32 %v404, %v1101
    %v1104 = vstv %s202
    %v1105 = vmul.f32 %v439, %v1104
    %v1106 = vmul.f32 %v440, %v1104
    %v1107 = vstv %s212
    %v1108 = vmul.f32 %v475, %v1107
    %v1109 = vmul.f32 %v476, %v1107
    %v1110 = vstv %s222
    %v1111 = vmul.f32 %v511, %v1110
    %v1112 = vmul.f32 %v512, %v1110
    %v1113 = vstv %s232
    %v1114 = vmul.f32 %v547, %v1113
    %v1115 = vmul.f32 %v548, %v1113
    %v1116 = vstv %s242
    %v1117 = vmul.f32 %v583, %v1116
    %v1118 = vmul.f32 %v584, %v1116
    %v1119 = vstv %s252
    %v1120 = vmul.f32 %v619, %v1119
    %v1121 = vmul.f32 %v620, %v1119
    %v1122 = vstv %s262
    %v1123 = vmul.f32 %v655, %v1122
    %v1124 = vmul.f32 %v656, %v1122
    %v1125 = vstv %s272
    %v1126 = vmul.f32 %v691, %v1125
    %v1127 = vmul.f32 %v692, %v1125
    %v1128 = vadd.f32 %v1099, %v1102
    %v1129 = vadd.f32 %v1100, %v1103
    %v1130 = vadd.f32 %v1105, %v1108
    %v1131 = vadd.f32 %v1106, %v1109
    %v1132 = vadd.f32 %v1111, %v1114
    %v1133 = vadd.f32 %v1112, %v1115
    %v1134 = vadd.f32 %v1117, %v1120
    %v1135 = vadd.f32 %v1118, %v1121
    %v1136 = vadd.f32 %v1123, %v1126
    %v1137 = vadd.f32 %v1124, %v1127
    %v1138 = vadd.f32 %v1128, %v1130
    %v1139 = vadd.f32 %v1129, %v1131
    %v1140 = vadd.f32 %v1132, %v1134
    %v1141 = vadd.f32 %v1133, %v1135
    %v1142 = vadd.f32 %v1138, %v1140
    %v1143 = vadd.f32 %v1139, %v1141
    %v1144 = vadd.f32 %v1142, %v1136
    %v1145 = vadd.f32 %v1143, %v1137
    %v1146 = vstv %s282
    %v1147 = vadd.f32 %v1144, %v1146
    %v1148 = vadd.f32 %v1145, %v1146
    %v1149 = vmax.f32 %v1147, 0.0
    %v1150 = vmax.f32 %v1148, 0.0
    %v1151 = vand.u32 2147483647, %v1147
    %v1152 = vand.u32 2147483647, %v1148
    %v1153 = vsub.f32 0.0, %v1151
    %v1154 = vsub.f32 0.0, %v1152
    %v1155 = vmul.f32 %v1153, 1.442695
    %v1156 = vpow.pop %v1155
    %v1157 = vmul.f32 %v1154, 1.442695
    %v1158 = vpow.pop %v1157
    %v1159 = vadd.f32 %v1156, 1.0
    %v1160 = vlog2.pop %v1159
    %v1161 = vmul.f32 %v1160, 0.6931472
    %v1162 = vmul.f32 -0.5, %v1156
    %v1163 = vadd.f32 %v1162, 1.0
    %v1164 = vmul.f32 %v1163, %v1156
    %v1165 = vand.u32 2147483647, %v1156
    %vm1166 = vcmp.lt.f32.partialorder %v1165, 0.0004427343
    %v1167 = vsel %vm1166, %v1164, %v1161
    %v1168 = vadd.f32 %v1158, 1.0
    %v1169 = vlog2.pop %v1168
    %v1170 = vmul.f32 %v1169, 0.6931472
    %v1171 = vmul.f32 -0.5, %v1158
    %v1172 = vadd.f32 %v1171, 1.0
    %v1173 = vmul.f32 %v1172, %v1158
    %v1174 = vand.u32 2147483647, %v1158
    %vm1175 = vcmp.lt.f32.partialorder %v1174, 0.0004427343
    %v1176 = vsel %vm1175, %v1173, %v1170
    %v1177 = vadd.f32 %v1149, %v1167
    %v1178 = vadd.f32 %v1150, %v1176
    %v1179 = vstv %s183
    %v1180 = vmul.f32 %v367, %v1179
    %v1181 = vmul.f32 %v368, %v1179
    %v1182 = vstv %s193
    %v1183 = vmul.f32 %v403, %v1182
    %v1184 = vmul.f32 %v404, %v1182
    %v1185 = vstv %s203
    %v1186 = vmul.f32 %v439, %v1185
    %v1187 = vmul.f32 %v440, %v1185
    %v1188 = vstv %s213
    %v1189 = vmul.f32 %v475, %v1188
    %v1190 = vmul.f32 %v476, %v1188
    %v1191 = vstv %s223
    %v1192 = vmul.f32 %v511, %v1191
    %v1193 = vmul.f32 %v512, %v1191
    %v1194 = vstv %s233
    %v1195 = vmul.f32 %v547, %v1194
    %v1196 = vmul.f32 %v548, %v1194
    %v1197 = vstv %s243
    %v1198 = vmul.f32 %v583, %v1197
    %v1199 = vmul.f32 %v584, %v1197
    %v1200 = vstv %s253
    %v1201 = vmul.f32 %v619, %v1200
    %v1202 = vmul.f32 %v620, %v1200
    %v1203 = vstv %s263
    %v1204 = vmul.f32 %v655, %v1203
    %v1205 = vmul.f32 %v656, %v1203
    %v1206 = vstv %s273
    %v1207 = vmul.f32 %v691, %v1206
    %v1208 = vmul.f32 %v692, %v1206
    %v1209 = vadd.f32 %v1180, %v1183
    %v1210 = vadd.f32 %v1181, %v1184
    %v1211 = vadd.f32 %v1186, %v1189
    %v1212 = vadd.f32 %v1187, %v1190
    %v1213 = vadd.f32 %v1192, %v1195
    %v1214 = vadd.f32 %v1193, %v1196
    %v1215 = vadd.f32 %v1198, %v1201
    %v1216 = vadd.f32 %v1199, %v1202
    %v1217 = vadd.f32 %v1204, %v1207
    %v1218 = vadd.f32 %v1205, %v1208
    %v1219 = vadd.f32 %v1209, %v1211
    %v1220 = vadd.f32 %v1210, %v1212
    %v1221 = vadd.f32 %v1213, %v1215
    %v1222 = vadd.f32 %v1214, %v1216
    %v1223 = vadd.f32 %v1219, %v1221
    %v1224 = vadd.f32 %v1220, %v1222
    %v1225 = vadd.f32 %v1223, %v1217
    %v1226 = vadd.f32 %v1224, %v1218
    %v1227 = vstv %s283
    %v1228 = vadd.f32 %v1225, %v1227
    %v1229 = vadd.f32 %v1226, %v1227
    %v1230 = vmax.f32 %v1228, 0.0
    %v1231 = vmax.f32 %v1229, 0.0
    %v1232 = vand.u32 2147483647, %v1228
    %v1233 = vand.u32 2147483647, %v1229
    %v1234 = vsub.f32 0.0, %v1232
    %v1235 = vsub.f32 0.0, %v1233
    %v1236 = vmul.f32 %v1234, 1.442695
    %v1237 = vpow.pop %v1236
    %v1238 = vmul.f32 %v1235, 1.442695
    %v1239 = vpow.pop %v1238
    %v1240 = vadd.f32 %v1237, 1.0
    %v1241 = vlog2.pop %v1240
    %v1242 = vmul.f32 %v1241, 0.6931472
    %v1243 = vmul.f32 -0.5, %v1237
    %v1244 = vadd.f32 %v1243, 1.0
    %v1245 = vmul.f32 %v1244, %v1237
    %v1246 = vand.u32 2147483647, %v1237
    %vm1247 = vcmp.lt.f32.partialorder %v1246, 0.0004427343
    %v1248 = vsel %vm1247, %v1245, %v1242
    %v1249 = vadd.f32 %v1239, 1.0
    %v1250 = vlog2.pop %v1249
    %v1251 = vmul.f32 %v1250, 0.6931472
    %v1252 = vmul.f32 -0.5, %v1239
    %v1253 = vadd.f32 %v1252, 1.0
    %v1254 = vmul.f32 %v1253, %v1239
    %v1255 = vand.u32 2147483647, %v1239
    %vm1256 = vcmp.lt.f32.partialorder %v1255, 0.0004427343
    %v1257 = vsel %vm1256, %v1254, %v1251
    %v1258 = vadd.f32 %v1230, %v1248
    %v1259 = vadd.f32 %v1231, %v1257
    %v1260 = vstv %s184
    %v1261 = vmul.f32 %v367, %v1260
    %v1262 = vmul.f32 %v368, %v1260
    %v1263 = vstv %s194
    %v1264 = vmul.f32 %v403, %v1263
    %v1265 = vmul.f32 %v404, %v1263
    %v1266 = vstv %s204
    %v1267 = vmul.f32 %v439, %v1266
    %v1268 = vmul.f32 %v440, %v1266
    %v1269 = vstv %s214
    %v1270 = vmul.f32 %v475, %v1269
    %v1271 = vmul.f32 %v476, %v1269
    %v1272 = vstv %s224
    %v1273 = vmul.f32 %v511, %v1272
    %v1274 = vmul.f32 %v512, %v1272
    %v1275 = vstv %s234
    %v1276 = vmul.f32 %v547, %v1275
    %v1277 = vmul.f32 %v548, %v1275
    %v1278 = vstv %s244
    %v1279 = vmul.f32 %v583, %v1278
    %v1280 = vmul.f32 %v584, %v1278
    %v1281 = vstv %s254
    %v1282 = vmul.f32 %v619, %v1281
    %v1283 = vmul.f32 %v620, %v1281
    %v1284 = vstv %s264
    %v1285 = vmul.f32 %v655, %v1284
    %v1286 = vmul.f32 %v656, %v1284
    %v1287 = vstv %s274
    %v1288 = vmul.f32 %v691, %v1287
    %v1289 = vmul.f32 %v692, %v1287
    %v1290 = vadd.f32 %v1261, %v1264
    %v1291 = vadd.f32 %v1262, %v1265
    %v1292 = vadd.f32 %v1267, %v1270
    %v1293 = vadd.f32 %v1268, %v1271
    %v1294 = vadd.f32 %v1273, %v1276
    %v1295 = vadd.f32 %v1274, %v1277
    %v1296 = vadd.f32 %v1279, %v1282
    %v1297 = vadd.f32 %v1280, %v1283
    %v1298 = vadd.f32 %v1285, %v1288
    %v1299 = vadd.f32 %v1286, %v1289
    %v1300 = vadd.f32 %v1290, %v1292
    %v1301 = vadd.f32 %v1291, %v1293
    %v1302 = vadd.f32 %v1294, %v1296
    %v1303 = vadd.f32 %v1295, %v1297
    %v1304 = vadd.f32 %v1300, %v1302
    %v1305 = vadd.f32 %v1301, %v1303
    %v1306 = vadd.f32 %v1304, %v1298
    %v1307 = vadd.f32 %v1305, %v1299
    %v1308 = vstv %s284
    %v1309 = vadd.f32 %v1306, %v1308
    %v1310 = vadd.f32 %v1307, %v1308
    %v1311 = vmax.f32 %v1309, 0.0
    %v1312 = vmax.f32 %v1310, 0.0
    %v1313 = vand.u32 2147483647, %v1309
    %v1314 = vand.u32 2147483647, %v1310
    %v1315 = vsub.f32 0.0, %v1313
    %v1316 = vsub.f32 0.0, %v1314
    %v1317 = vmul.f32 %v1315, 1.442695
    %v1318 = vpow.pop %v1317
    %v1319 = vmul.f32 %v1316, 1.442695
    %v1320 = vpow.pop %v1319
    %v1321 = vadd.f32 %v1318, 1.0
    %v1322 = vlog2.pop %v1321
    %v1323 = vmul.f32 %v1322, 0.6931472
    %v1324 = vmul.f32 -0.5, %v1318
    %v1325 = vadd.f32 %v1324, 1.0
    %v1326 = vmul.f32 %v1325, %v1318
    %v1327 = vand.u32 2147483647, %v1318
    %vm1328 = vcmp.lt.f32.partialorder %v1327, 0.0004427343
    %v1329 = vsel %vm1328, %v1326, %v1323
    %v1330 = vadd.f32 %v1320, 1.0
    %v1331 = vlog2.pop %v1330
    %v1332 = vmul.f32 %v1331, 0.6931472
    %v1333 = vmul.f32 -0.5, %v1320
    %v1334 = vadd.f32 %v1333, 1.0
    %v1335 = vmul.f32 %v1334, %v1320
    %v1336 = vand.u32 2147483647, %v1320
    %vm1337 = vcmp.lt.f32.partialorder %v1336, 0.0004427343
    %v1338 = vsel %vm1337, %v1335, %v1332
    %v1339 = vadd.f32 %v1311, %v1329
    %v1340 = vadd.f32 %v1312, %v1338
    %v1341 = vstv %s185
    %v1342 = vmul.f32 %v367, %v1341
    %v1343 = vmul.f32 %v368, %v1341
    %v1344 = vstv %s195
    %v1345 = vmul.f32 %v403, %v1344
    %v1346 = vmul.f32 %v404, %v1344
    %v1347 = vstv %s205
    %v1348 = vmul.f32 %v439, %v1347
    %v1349 = vmul.f32 %v440, %v1347
    %v1350 = vstv %s215
    %v1351 = vmul.f32 %v475, %v1350
    %v1352 = vmul.f32 %v476, %v1350
    %v1353 = vstv %s225
    %v1354 = vmul.f32 %v511, %v1353
    %v1355 = vmul.f32 %v512, %v1353
    %v1356 = vstv %s235
    %v1357 = vmul.f32 %v547, %v1356
    %v1358 = vmul.f32 %v548, %v1356
    %v1359 = vstv %s245
    %v1360 = vmul.f32 %v583, %v1359
    %v1361 = vmul.f32 %v584, %v1359
    %v1362 = vstv %s255
    %v1363 = vmul.f32 %v619, %v1362
    %v1364 = vmul.f32 %v620, %v1362
    %v1365 = vstv %s265
    %v1366 = vmul.f32 %v655, %v1365
    %v1367 = vmul.f32 %v656, %v1365
    %v1368 = vstv %s275
    %v1369 = vmul.f32 %v691, %v1368
    %v1370 = vmul.f32 %v692, %v1368
    %v1371 = vadd.f32 %v1342, %v1345
    %v1372 = vadd.f32 %v1343, %v1346
    %v1373 = vadd.f32 %v1348, %v1351
    %v1374 = vadd.f32 %v1349, %v1352
    %v1375 = vadd.f32 %v1354, %v1357
    %v1376 = vadd.f32 %v1355, %v1358
    %v1377 = vadd.f32 %v1360, %v1363
    %v1378 = vadd.f32 %v1361, %v1364
    %v1379 = vadd.f32 %v1366, %v1369
    %v1380 = vadd.f32 %v1367, %v1370
    %v1381 = vadd.f32 %v1371, %v1373
    %v1382 = vadd.f32 %v1372, %v1374
    %v1383 = vadd.f32 %v1375, %v1377
    %v1384 = vadd.f32 %v1376, %v1378
    %v1385 = vadd.f32 %v1381, %v1383
    %v1386 = vadd.f32 %v1382, %v1384
    %v1387 = vadd.f32 %v1385, %v1379
    %v1388 = vadd.f32 %v1386, %v1380
    %v1389 = vstv %s285
    %v1390 = vadd.f32 %v1387, %v1389
    %v1391 = vadd.f32 %v1388, %v1389
    %v1392 = vmax.f32 %v1390, 0.0
    %v1393 = vmax.f32 %v1391, 0.0
    %v1394 = vand.u32 2147483647, %v1390
    %v1395 = vand.u32 2147483647, %v1391
    %v1396 = vsub.f32 0.0, %v1394
    %v1397 = vsub.f32 0.0, %v1395
    %v1398 = vmul.f32 %v1396, 1.442695
    %v1399 = vpow.pop %v1398
    %v1400 = vmul.f32 %v1397, 1.442695
    %v1401 = vpow.pop %v1400
    %v1402 = vadd.f32 %v1399, 1.0
    %v1403 = vlog2.pop %v1402
    %v1404 = vmul.f32 %v1403, 0.6931472
    %v1405 = vmul.f32 -0.5, %v1399
    %v1406 = vadd.f32 %v1405, 1.0
    %v1407 = vmul.f32 %v1406, %v1399
    %v1408 = vand.u32 2147483647, %v1399
    %vm1409 = vcmp.lt.f32.partialorder %v1408, 0.0004427343
    %v1410 = vsel %vm1409, %v1407, %v1404
    %v1411 = vadd.f32 %v1401, 1.0
    %v1412 = vlog2.pop %v1411
    %v1413 = vmul.f32 %v1412, 0.6931472
    %v1414 = vmul.f32 -0.5, %v1401
    %v1415 = vadd.f32 %v1414, 1.0
    %v1416 = vmul.f32 %v1415, %v1401
    %v1417 = vand.u32 2147483647, %v1401
    %vm1418 = vcmp.lt.f32.partialorder %v1417, 0.0004427343
    %v1419 = vsel %vm1418, %v1416, %v1413
    %v1420 = vadd.f32 %v1392, %v1410
    %v1421 = vadd.f32 %v1393, %v1419
    %v1422 = vstv %s186
    %v1423 = vmul.f32 %v367, %v1422
    %v1424 = vmul.f32 %v368, %v1422
    %v1425 = vstv %s196
    %v1426 = vmul.f32 %v403, %v1425
    %v1427 = vmul.f32 %v404, %v1425
    %v1428 = vstv %s206
    %v1429 = vmul.f32 %v439, %v1428
    %v1430 = vmul.f32 %v440, %v1428
    %v1431 = vstv %s216
    %v1432 = vmul.f32 %v475, %v1431
    %v1433 = vmul.f32 %v476, %v1431
    %v1434 = vstv %s226
    %v1435 = vmul.f32 %v511, %v1434
    %v1436 = vmul.f32 %v512, %v1434
    %v1437 = vstv %s236
    %v1438 = vmul.f32 %v547, %v1437
    %v1439 = vmul.f32 %v548, %v1437
    %v1440 = vstv %s246
    %v1441 = vmul.f32 %v583, %v1440
    %v1442 = vmul.f32 %v584, %v1440
    %v1443 = vstv %s256
    %v1444 = vmul.f32 %v619, %v1443
    %v1445 = vmul.f32 %v620, %v1443
    %v1446 = vstv %s266
    %v1447 = vmul.f32 %v655, %v1446
    %v1448 = vmul.f32 %v656, %v1446
    %v1449 = vstv %s276
    %v1450 = vmul.f32 %v691, %v1449
    %v1451 = vmul.f32 %v692, %v1449
    %v1452 = vadd.f32 %v1423, %v1426
    %v1453 = vadd.f32 %v1424, %v1427
    %v1454 = vadd.f32 %v1429, %v1432
    %v1455 = vadd.f32 %v1430, %v1433
    %v1456 = vadd.f32 %v1435, %v1438
    %v1457 = vadd.f32 %v1436, %v1439
    %v1458 = vadd.f32 %v1441, %v1444
    %v1459 = vadd.f32 %v1442, %v1445
    %v1460 = vadd.f32 %v1447, %v1450
    %v1461 = vadd.f32 %v1448, %v1451
    %v1462 = vadd.f32 %v1452, %v1454
    %v1463 = vadd.f32 %v1453, %v1455
    %v1464 = vadd.f32 %v1456, %v1458
    %v1465 = vadd.f32 %v1457, %v1459
    %v1466 = vadd.f32 %v1462, %v1464
    %v1467 = vadd.f32 %v1463, %v1465
    %v1468 = vadd.f32 %v1466, %v1460
    %v1469 = vadd.f32 %v1467, %v1461
    %v1470 = vstv %s286
    %v1471 = vadd.f32 %v1468, %v1470
    %v1472 = vadd.f32 %v1469, %v1470
    %v1473 = vmax.f32 %v1471, 0.0
    %v1474 = vmax.f32 %v1472, 0.0
    %v1475 = vand.u32 2147483647, %v1471
    %v1476 = vand.u32 2147483647, %v1472
    %v1477 = vsub.f32 0.0, %v1475
    %v1478 = vsub.f32 0.0, %v1476
    %v1479 = vmul.f32 %v1477, 1.442695
    %v1480 = vpow.pop %v1479
    %v1481 = vmul.f32 %v1478, 1.442695
    %v1482 = vpow.pop %v1481
    %v1483 = vadd.f32 %v1480, 1.0
    %v1484 = vlog2.pop %v1483
    %v1485 = vmul.f32 %v1484, 0.6931472
    %v1486 = vmul.f32 -0.5, %v1480
    %v1487 = vadd.f32 %v1486, 1.0
    %v1488 = vmul.f32 %v1487, %v1480
    %v1489 = vand.u32 2147483647, %v1480
    %vm1490 = vcmp.lt.f32.partialorder %v1489, 0.0004427343
    %v1491 = vsel %vm1490, %v1488, %v1485
    %v1492 = vadd.f32 %v1482, 1.0
    %v1493 = vlog2.pop %v1492
    %v1494 = vmul.f32 %v1493, 0.6931472
    %v1495 = vmul.f32 -0.5, %v1482
    %v1496 = vadd.f32 %v1495, 1.0
    %v1497 = vmul.f32 %v1496, %v1482
    %v1498 = vand.u32 2147483647, %v1482
    %vm1499 = vcmp.lt.f32.partialorder %v1498, 0.0004427343
    %v1500 = vsel %vm1499, %v1497, %v1494
    %v1501 = vadd.f32 %v1473, %v1491
    %v1502 = vadd.f32 %v1474, %v1500
    %v1503 = vstv %s287
    %v1504 = vmul.f32 %v772, %v1503
    %v1505 = vmul.f32 %v773, %v1503
    %v1506 = vstv %s288
    %v1507 = vmul.f32 %v853, %v1506
    %v1508 = vmul.f32 %v854, %v1506
    %v1509 = vstv %s289
    %v1510 = vmul.f32 %v934, %v1509
    %v1511 = vmul.f32 %v935, %v1509
    %v1512 = vstv %s290
    %v1513 = vmul.f32 %v1015, %v1512
    %v1514 = vmul.f32 %v1016, %v1512
    %v1515 = vstv %s291
    %v1516 = vmul.f32 %v1096, %v1515
    %v1517 = vmul.f32 %v1097, %v1515
    %v1518 = vstv %s292
    %v1519 = vmul.f32 %v1177, %v1518
    %v1520 = vmul.f32 %v1178, %v1518
    %v1521 = vstv %s293
    %v1522 = vmul.f32 %v1258, %v1521
    %v1523 = vmul.f32 %v1259, %v1521
    %v1524 = vstv %s294
    %v1525 = vmul.f32 %v1339, %v1524
    %v1526 = vmul.f32 %v1340, %v1524
    %v1527 = vstv %s295
    %v1528 = vmul.f32 %v1420, %v1527
    %v1529 = vmul.f32 %v1421, %v1527
    %v1530 = vstv %s296
    %v1531 = vmul.f32 %v1501, %v1530
    %v1532 = vmul.f32 %v1502, %v1530
    %v1533 = vadd.f32 %v1504, %v1507
    %v1534 = vadd.f32 %v1505, %v1508
    %v1535 = vadd.f32 %v1510, %v1513
    %v1536 = vadd.f32 %v1511, %v1514
    %v1537 = vadd.f32 %v1516, %v1519
    %v1538 = vadd.f32 %v1517, %v1520
    %v1539 = vadd.f32 %v1522, %v1525
    %v1540 = vadd.f32 %v1523, %v1526
    %v1541 = vadd.f32 %v1528, %v1531
    %v1542 = vadd.f32 %v1529, %v1532
    %v1543 = vadd.f32 %v1533, %v1535
    %v1544 = vadd.f32 %v1534, %v1536
    %v1545 = vadd.f32 %v1537, %v1539
    %v1546 = vadd.f32 %v1538, %v1540
    %v1547 = vadd.f32 %v1543, %v1545
    %v1548 = vadd.f32 %v1544, %v1546
    %v1549 = vadd.f32 %v1547, %v1541
    %v1550 = vadd.f32 %v1548, %v1542
    %v1551 = vstv %s297
    %v1552 = vadd.f32 %v1549, %v1551
    %v1553 = vadd.f32 %v1550, %v1551
    %1554 = vst [vmem:[#allocation22] sm:$0xff] %v1552
    %1555 = vst [vmem:[#allocation22 + $0x8] sm:$0xff] %v1553
    %v1556 = vstv %s298
    %v1557 = vmul.f32 %v772, %v1556
    %v1558 = vmul.f32 %v773, %v1556
    %v1559 = vstv %s299
    %v1560 = vmul.f32 %v853, %v1559
    %v1561 = vmul.f32 %v854, %v1559
    %v1562 = vstv %s300
    %v1563 = vmul.f32 %v934, %v1562
    %v1564 = vmul.f32 %v935, %v1562
    %v1565 = vstv %s301
    %v1566 = vmul.f32 %v1015, %v1565
    %v1567 = vmul.f32 %v1016, %v1565
    %v1568 = vstv %s302
    %v1569 = vmul.f32 %v1096, %v1568
    %v1570 = vmul.f32 %v1097, %v1568
    %v1571 = vstv %s303
    %v1572 = vmul.f32 %v1177, %v1571
    %v1573 = vmul.f32 %v1178, %v1571
    %v1574 = vstv %s304
    %v1575 = vmul.f32 %v1258, %v1574
    %v1576 = vmul.f32 %v1259, %v1574
    %v1577 = vstv %s305
    %v1578 = vmul.f32 %v1339, %v1577
    %v1579 = vmul.f32 %v1340, %v1577
    %v1580 = vstv %s306
    %v1581 = vmul.f32 %v1420, %v1580
    %v1582 = vmul.f32 %v1421, %v1580
    %v1583 = vstv %s307
    %v1584 = vmul.f32 %v1501, %v1583
    %v1585 = vmul.f32 %v1502, %v1583
    %v1586 = vadd.f32 %v1557, %v1560
    %v1587 = vadd.f32 %v1558, %v1561
    %v1588 = vadd.f32 %v1563, %v1566
    %v1589 = vadd.f32 %v1564, %v1567
    %v1590 = vadd.f32 %v1569, %v1572
    %v1591 = vadd.f32 %v1570, %v1573
    %v1592 = vadd.f32 %v1575, %v1578
    %v1593 = vadd.f32 %v1576, %v1579
    %v1594 = vadd.f32 %v1581, %v1584
    %v1595 = vadd.f32 %v1582, %v1585
    %v1596 = vadd.f32 %v1586, %v1588
    %v1597 = vadd.f32 %v1587, %v1589
    %v1598 = vadd.f32 %v1590, %v1592
    %v1599 = vadd.f32 %v1591, %v1593
    %v1600 = vadd.f32 %v1596, %v1598
    %v1601 = vadd.f32 %v1597, %v1599
    %v1602 = vadd.f32 %v1600, %v1594
    %v1603 = vadd.f32 %v1601, %v1595
    %v1604 = vstv %s308
    %v1605 = vadd.f32 %v1602, %v1604
    %v1606 = vadd.f32 %v1603, %v1604
    %v1607 = vmax.f32 %v1605, 0.0
    %v1608 = vmax.f32 %v1606, 0.0
    %v1609 = vand.u32 2147483647, %v1605
    %v1610 = vand.u32 2147483647, %v1606
    %v1611 = vsub.f32 0.0, %v1609
    %v1612 = vsub.f32 0.0, %v1610
    %v1613 = vmul.f32 %v1611, 1.442695
    %v1614 = vpow.pop %v1613
    %v1615 = vmul.f32 %v1612, 1.442695
    %v1616 = vpow.pop %v1615
    %v1617 = vadd.f32 %v1614, 1.0
    %v1618 = vlog2.pop %v1617
    %v1619 = vmul.f32 %v1618, 0.6931472
    %v1620 = vmul.f32 -0.5, %v1614
    %v1621 = vadd.f32 %v1620, 1.0
    %v1622 = vmul.f32 %v1621, %v1614
    %v1623 = vand.u32 2147483647, %v1614
    %vm1624 = vcmp.lt.f32.partialorder %v1623, 0.0004427343
    %v1625 = vsel %vm1624, %v1622, %v1619
    %v1626 = vadd.f32 %v1616, 1.0
    %v1627 = vlog2.pop %v1626
    %v1628 = vmul.f32 %v1627, 0.6931472
    %v1629 = vmul.f32 -0.5, %v1616
    %v1630 = vadd.f32 %v1629, 1.0
    %v1631 = vmul.f32 %v1630, %v1616
    %v1632 = vand.u32 2147483647, %v1616
    %vm1633 = vcmp.lt.f32.partialorder %v1632, 0.0004427343
    %v1634 = vsel %vm1633, %v1631, %v1628
    %v1635 = vadd.f32 %v1607, %v1625
    %v1636 = vadd.f32 %v1608, %v1634
    %s1637 = sadd.s32 0, 16
    %s1638 = scalar_lea.vmem [#allocation22], %s1637
    %1639 = vst [vmem:[%s1638] sm:$0xff] %v1635
    %1640 = vst [vmem:[%s1638 + $0x8] sm:$0xff] %v1636
    %v1641 = vstv %s309
    %v1642 = vmul.f32 %v772, %v1641
    %v1643 = vmul.f32 %v773, %v1641
    %v1644 = vstv %s310
    %v1645 = vmul.f32 %v853, %v1644
    %v1646 = vmul.f32 %v854, %v1644
    %v1647 = vstv %s311
    %v1648 = vmul.f32 %v934, %v1647
    %v1649 = vmul.f32 %v935, %v1647
    %v1650 = vstv %s312
    %v1651 = vmul.f32 %v1015, %v1650
    %v1652 = vmul.f32 %v1016, %v1650
    %v1653 = vstv %s313
    %v1654 = vmul.f32 %v1096, %v1653
    %v1655 = vmul.f32 %v1097, %v1653
    %v1656 = vstv %s314
    %v1657 = vmul.f32 %v1177, %v1656
    %v1658 = vmul.f32 %v1178, %v1656
    %v1659 = vstv %s315
    %v1660 = vmul.f32 %v1258, %v1659
    %v1661 = vmul.f32 %v1259, %v1659
    %v1662 = vstv %s316
    %v1663 = vmul.f32 %v1339, %v1662
    %v1664 = vmul.f32 %v1340, %v1662
    %v1665 = vstv %s317
    %v1666 = vmul.f32 %v1420, %v1665
    %v1667 = vmul.f32 %v1421, %v1665
    %v1668 = vstv %s318
    %v1669 = vmul.f32 %v1501, %v1668
    %v1670 = vmul.f32 %v1502, %v1668
    %v1671 = vadd.f32 %v1642, %v1645
    %v1672 = vadd.f32 %v1643, %v1646
    %v1673 = vadd.f32 %v1648, %v1651
    %v1674 = vadd.f32 %v1649, %v1652
    %v1675 = vadd.f32 %v1654, %v1657
    %v1676 = vadd.f32 %v1655, %v1658
    %v1677 = vadd.f32 %v1660, %v1663
    %v1678 = vadd.f32 %v1661, %v1664
    %v1679 = vadd.f32 %v1666, %v1669
    %v1680 = vadd.f32 %v1667, %v1670
    %v1681 = vadd.f32 %v1671, %v1673
    %v1682 = vadd.f32 %v1672, %v1674
    %v1683 = vadd.f32 %v1675, %v1677
    %v1684 = vadd.f32 %v1676, %v1678
    %v1685 = vadd.f32 %v1681, %v1683
    %v1686 = vadd.f32 %v1682, %v1684
    %v1687 = vadd.f32 %v1685, %v1679
    %v1688 = vadd.f32 %v1686, %v1680
    %v1689 = vstv %s319
    %v1690 = vadd.f32 %v1687, %v1689
    %v1691 = vadd.f32 %v1688, %v1689
    %v1692 = vmax.f32 %v1690, 0.0
    %v1693 = vmax.f32 %v1691, 0.0
    %v1694 = vand.u32 2147483647, %v1690
    %v1695 = vand.u32 2147483647, %v1691
    %v1696 = vsub.f32 0.0, %v1694
    %v1697 = vsub.f32 0.0, %v1695
    %v1698 = vmul.f32 %v1696, 1.442695
    %v1699 = vpow.pop %v1698
    %v1700 = vmul.f32 %v1697, 1.442695
    %v1701 = vpow.pop %v1700
    %v1702 = vadd.f32 %v1699, 1.0
    %v1703 = vlog2.pop %v1702
    %v1704 = vmul.f32 %v1703, 0.6931472
    %v1705 = vmul.f32 -0.5, %v1699
    %v1706 = vadd.f32 %v1705, 1.0
    %v1707 = vmul.f32 %v1706, %v1699
    %v1708 = vand.u32 2147483647, %v1699
    %vm1709 = vcmp.lt.f32.partialorder %v1708, 0.0004427343
    %v1710 = vsel %vm1709, %v1707, %v1704
    %v1711 = vadd.f32 %v1701, 1.0
    %v1712 = vlog2.pop %v1711
    %v1713 = vmul.f32 %v1712, 0.6931472
    %v1714 = vmul.f32 -0.5, %v1701
    %v1715 = vadd.f32 %v1714, 1.0
    %v1716 = vmul.f32 %v1715, %v1701
    %v1717 = vand.u32 2147483647, %v1701
    %vm1718 = vcmp.lt.f32.partialorder %v1717, 0.0004427343
    %v1719 = vsel %vm1718, %v1716, %v1713
    %v1720 = vadd.f32 %v1692, %v1710
    %v1721 = vadd.f32 %v1693, %v1719
    %v1722 = vadd.f32 %v1720, 1.0
    %v1723 = vadd.f32 %v1721, 1.0
    %s1724 = sadd.s32 0, 32
    %s1725 = scalar_lea.vmem [#allocation22], %s1724
    %1726 = vst [vmem:[%s1725] sm:$0xff] %v1722
    %1727 = vst [vmem:[%s1725 + $0x8] sm:$0xff] %v1723
    %v1728 = vstv %s320
    %v1729 = vmul.f32 %v772, %v1728
    %v1730 = vmul.f32 %v773, %v1728
    %v1731 = vstv %s321
    %v1732 = vmul.f32 %v853, %v1731
    %v1733 = vmul.f32 %v854, %v1731
    %v1734 = vstv %s322
    %v1735 = vmul.f32 %v934, %v1734
    %v1736 = vmul.f32 %v935, %v1734
    %v1737 = vstv %s323
    %v1738 = vmul.f32 %v1015, %v1737
    %v1739 = vmul.f32 %v1016, %v1737
    %v1740 = vstv %s324
    %v1741 = vmul.f32 %v1096, %v1740
    %v1742 = vmul.f32 %v1097, %v1740
    %v1743 = vstv %s325
    %v1744 = vmul.f32 %v1177, %v1743
    %v1745 = vmul.f32 %v1178, %v1743
    %v1746 = vstv %s326
    %v1747 = vmul.f32 %v1258, %v1746
    %v1748 = vmul.f32 %v1259, %v1746
    %v1749 = vstv %s327
    %v1750 = vmul.f32 %v1339, %v1749
    %v1751 = vmul.f32 %v1340, %v1749
    %v1752 = vstv %s328
    %v1753 = vmul.f32 %v1420, %v1752
    %v1754 = vmul.f32 %v1421, %v1752
    %v1755 = vstv %s329
    %v1756 = vmul.f32 %v1501, %v1755
    %v1757 = vmul.f32 %v1502, %v1755
    %v1758 = vadd.f32 %v1729, %v1732
    %v1759 = vadd.f32 %v1730, %v1733
    %v1760 = vadd.f32 %v1735, %v1738
    %v1761 = vadd.f32 %v1736, %v1739
    %v1762 = vadd.f32 %v1741, %v1744
    %v1763 = vadd.f32 %v1742, %v1745
    %v1764 = vadd.f32 %v1747, %v1750
    %v1765 = vadd.f32 %v1748, %v1751
    %v1766 = vadd.f32 %v1753, %v1756
    %v1767 = vadd.f32 %v1754, %v1757
    %v1768 = vadd.f32 %v1758, %v1760
    %v1769 = vadd.f32 %v1759, %v1761
    %v1770 = vadd.f32 %v1762, %v1764
    %v1771 = vadd.f32 %v1763, %v1765
    %v1772 = vadd.f32 %v1768, %v1770
    %v1773 = vadd.f32 %v1769, %v1771
    %v1774 = vadd.f32 %v1772, %v1766
    %v1775 = vadd.f32 %v1773, %v1767
    %v1776 = vstv %s330
    %v1777 = vadd.f32 %v1774, %v1776
    %v1778 = vadd.f32 %v1775, %v1776
    %v1779 = vmax.f32 %v1777, 0.0
    %v1780 = vmax.f32 %v1778, 0.0
    %v1781 = vand.u32 2147483647, %v1777
    %v1782 = vand.u32 2147483647, %v1778
    %v1783 = vsub.f32 0.0, %v1781
    %v1784 = vsub.f32 0.0, %v1782
    %v1785 = vmul.f32 %v1783, 1.442695
    %v1786 = vpow.pop %v1785
    %v1787 = vmul.f32 %v1784, 1.442695
    %v1788 = vpow.pop %v1787
    %v1789 = vadd.f32 %v1786, 1.0
    %v1790 = vlog2.pop %v1789
    %v1791 = vmul.f32 %v1790, 0.6931472
    %v1792 = vmul.f32 -0.5, %v1786
    %v1793 = vadd.f32 %v1792, 1.0
    %v1794 = vmul.f32 %v1793, %v1786
    %v1795 = vand.u32 2147483647, %v1786
    %vm1796 = vcmp.lt.f32.partialorder %v1795, 0.0004427343
    %v1797 = vsel %vm1796, %v1794, %v1791
    %v1798 = vadd.f32 %v1788, 1.0
    %v1799 = vlog2.pop %v1798
    %v1800 = vmul.f32 %v1799, 0.6931472
    %v1801 = vmul.f32 -0.5, %v1788
    %v1802 = vadd.f32 %v1801, 1.0
    %v1803 = vmul.f32 %v1802, %v1788
    %v1804 = vand.u32 2147483647, %v1788
    %vm1805 = vcmp.lt.f32.partialorder %v1804, 0.0004427343
    %v1806 = vsel %vm1805, %v1803, %v1800
    %v1807 = vadd.f32 %v1779, %v1797
    %v1808 = vadd.f32 %v1780, %v1806
    %s1809 = sadd.s32 0, 48
    %s1810 = scalar_lea.vmem [#allocation22], %s1809
    %1811 = vst [vmem:[%s1810] sm:$0xff] %v1807
    %1812 = vst [vmem:[%s1810 + $0x8] sm:$0xff] %v1808
    // Predicated region
    $region90: #{tpu_custom_call.1} parent=1 // pred_check
      _
    $region91: #{tpu_custom_call.1} parent=1 // pred_check_branch
      %1814 = sbr.rel (0) target = $region93
    $region92: #{tpu_custom_call.1} parent=1 // pred_region
      %s1816 = ssub.s32 1024, 1024
      %1817 = vsyncadd [#allocation8], %s1816
      %s1818 = sshll.u32 [#allocation22], 4
      %s1819 = int_to_ptr.vmem [resolvable:$true] %s1818
      %1824 = dma.vmem_to_hbm [thread:$0]  %s1819, 1024, %s13, [#allocation8], 128, 128, 8
    $region93: #{tpu_custom_call.1} parent=1 // pred_fallthru
      _
    // Predicated region
    $region94: #{tpu_custom_call.1} parent=1 // pred_check
      _
    $region95: #{tpu_custom_call.1} parent=1 // pred_check_branch
      %1826 = sbr.rel (0) target = $region97
    $region96: #{tpu_custom_call.1} parent=1 // pred_region
      %1827 = dma.done [#allocation8], 1024
    $region97: #{tpu_custom_call.1} parent=1 // pred_fallthru
      _
    %1828 = vsyncpa [#allocation7], 1
    %1829 = vsyncpa [#allocation8], 1
    %1830 = vsyncpa [#allocation9], 1
    %1831 = vsyncpa [#allocation12], 1
    %1832 = vsyncpa [#allocation15], 1
    %1833 = vsyncpa [#allocation18], 1
    %1834 = vsyncpa [#allocation21], 1

</llo_original>
